<compile_context>
chip_gen: v7x
topology: tpu7x:2x2x1
jax: 0.10.0
libtpu: 0.0.40
codegen_flags: <defaults>
</compile_context>

<pallas_src>
import functools

import jax
import jax.numpy as jnp
from jax.experimental import pallas as pl
from jax.experimental.pallas import tpu as pltpu

LN_EPS = 1e-5  # PyTorch nn.LayerNorm default


def _layer_norm_f32(y, gamma, beta):
    # var = E[y^2] - E[y]^2: two back-to-back lane reductions, one fewer
    # full-tile subtract+square pass than the naive two-pass form.
    mean = jnp.mean(y, axis=-1, keepdims=True)
    mean_sq = jnp.mean(y * y, axis=-1, keepdims=True)
    var = mean_sq - mean * mean
    return (y - mean) * jax.lax.rsqrt(var + LN_EPS) * gamma + beta


# ---------------------------------------------------------------------------
# Fused kernel: cross-attention + LN2 + feed-forward + LN3
# one (batch, seq-tile) per grid step
# ---------------------------------------------------------------------------
def decoder_layer_kernel(x_ref, k_ref, v_ref,
                         wq_ref, bq_ref, wo_ref, bo_ref,
                         g2_ref, be2_ref,
                         w1_ref, b1_ref, w2_ref, b2_ref,
                         g3_ref, be3_ref,
                         o_ref,
                         *, num_heads, compute_dtype):
    x_f32 = x_ref[...].astype(jnp.float32)          # (TS, D)
    x_c = x_f32.astype(compute_dtype)                # bf16 matmul operand
    TS, D = x_f32.shape
    dk = D // num_heads
    scale = 1.0 / (dk ** 0.5)

    # ---- cross attention: per-head Q proj + softmax(QK^T)V -----------------
    # Wq is laid out (H, D, dk) and K/V head-major (H, Se, dk), so every
    # per-head operand is a leading-axis index (no lane-axis slicing in loop).
    ctx_heads = []
    for h in range(num_heads):                       # static unroll, H is small
        qh = jnp.dot(x_c, wq_ref[h], preferred_element_type=jnp.float32)
        qh = (qh + bq_ref[h]) * scale                # (TS, dk) f32; 1/sqrt(dk) folded
        kh = k_ref[h]                                # (Se, dk) bf16
        vh = v_ref[h]                                # (Se, dk) bf16
        s = jax.lax.dot_general(qh.astype(compute_dtype), kh,
                                (((1,), (1,)), ((), ())),
                                preferred_element_type=jnp.float32)  # (TS, Se)
        s = s - jnp.max(s, axis=-1, keepdims=True)
        p = jnp.exp(s)
        p = p * pl.reciprocal(jnp.sum(p, axis=-1, keepdims=True), approx=True)
        ctx_heads.append(jnp.dot(p.astype(compute_dtype), vh,
                                 preferred_element_type=jnp.float32))  # (TS, dk)

    # single K=D output projection instead of H low-fill K=dk matmuls
    ctx = jnp.concatenate(ctx_heads, axis=-1)        # (TS, D) f32
    attn = jnp.dot(ctx.astype(compute_dtype), wo_ref[...],
                   preferred_element_type=jnp.float32) + bo_ref[...]

    # ---- residual + LayerNorm2 (f32) ---------------------------------------
    y2 = _layer_norm_f32(x_f32 + attn, g2_ref[...], be2_ref[...])

    # ---- feed-forward + residual + LayerNorm3 ------------------------------
    h1 = jnp.dot(y2.astype(compute_dtype), w1_ref[...],
                 preferred_element_type=jnp.float32) + b1_ref[...]
    h1 = jnp.maximum(h1, 0.0)                        # ReLU
    f = jnp.dot(h1.astype(compute_dtype), w2_ref[...],
                preferred_element_type=jnp.float32) + b2_ref[...]
    y3 = _layer_norm_f32(y2 + f, g3_ref[...], be3_ref[...])

    o_ref[...] = y3.astype(o_ref.dtype)


# ---------------------------------------------------------------------------
# Generation-aware tiling helpers
# ---------------------------------------------------------------------------
def _vmem_capacity_bytes():
    try:
        return int(pltpu.get_tpu_info().vmem_capacity_bytes)
    except Exception:
        return 64 * 1024 * 1024        # conservative fallback: v7x per-TC VMEM


def _min_sublane(dtype):
    return {4: 8, 2: 16, 1: 32}.get(jnp.dtype(dtype).itemsize, 8)


def _choose_seq_tile(S, dtype, cap):
    """Largest seq tile <= cap that divides S and respects dtype sublane tiling."""
    if S <= cap:
        return S
    m = _min_sublane(dtype)
    for ts in range(min(cap, S), m - 1, -1):
        if S % ts == 0 and ts % m == 0:
            return ts
    # TODO(synk): awkward S -> no seq tiling; consider padding S for very long
    # sequences instead of letting the full sequence blow VMEM.
    return S


# ---------------------------------------------------------------------------
# Wrapper
# ---------------------------------------------------------------------------
def decoder_layer(x, enc, params, num_heads, compute_dtype=jnp.bfloat16):
    B, S, D = x.shape
    Se = enc.shape[1]
    Dff = params["w1"].shape[1]
    assert D % num_heads == 0
    dk = D // num_heads
    cd = compute_dtype

    # ---- generation-aware tile / VMEM budget -------------------------------
    vmem_cap = _vmem_capacity_bytes()
    vmem_limit = min((vmem_cap * 3) // 4, 112 * 1024 * 1024)  # ~96MiB v5e/v6e, 48MiB v7x
    ts_cap = 512 if vmem_cap >= 96 * 1024 * 1024 else 256
    TS = _choose_seq_tile(S, x.dtype, ts_cap)
    n_s = S // TS

    # ---- encoder K/V projection in plain XLA (once, not per seq tile) ------
    k_enc = jnp.einsum("bsd,de->bse", enc.astype(cd), params["wk"].astype(cd),
                       preferred_element_type=jnp.float32) + params["bk"]
    v_enc = jnp.einsum("bsd,de->bse", enc.astype(cd), params["wv"].astype(cd),
                       preferred_element_type=jnp.float32) + params["bv"]

    def to_heads(t):                 # (B, Se, D) -> (B, H, Se, dk), compute dtype
        return t.reshape(B, Se, num_heads, dk).transpose(0, 2, 1, 3).astype(cd)

    k_h = to_heads(k_enc)
    v_h = to_heads(v_enc)

    # head-major Wq / bq so the kernel indexes heads on the leading axis only
    wq_h = params["wq"].reshape(D, num_heads, dk).transpose(1, 0, 2).astype(cd)  # (H, D, dk)
    bq_h = params["bq"].reshape(1, num_heads, dk).transpose(1, 0, 2)             # (H, 1, dk) f32
    wo_c = params["wo"].astype(cd)
    w1_c = params["w1"].astype(cd)
    w2_c = params["w2"].astype(cd)

    # constant-index inputs: single-buffered (never change across the grid)
    def const_spec(shape):
        return pl.BlockSpec(shape, lambda b, s: (0,) * len(shape),
                            pipeline_mode=pl.Buffered(1))

    cd_bytes = jnp.dtype(cd).itemsize
    x_bytes = jnp.dtype(x.dtype).itemsize
    cost = pl.CostEstimate(
        flops=int(2 * B * S * D * (2 * D + 2 * Se + 2 * Dff)),
        transcendentals=int(B * S * (num_heads * Se + 2)),
        bytes_accessed=int(2 * B * S * D * x_bytes                    # x in, out
                           + 2 * B * num_heads * Se * dk * cd_bytes   # K, V
                           + (2 * D * D + 2 * D * Dff) * cd_bytes),   # weights
    )

    kernel = functools.partial(decoder_layer_kernel,
                               num_heads=num_heads, compute_dtype=cd)
    return pl.pallas_call(
        kernel,
        out_shape=jax.ShapeDtypeStruct((B, S, D), x.dtype),
        grid_spec=pltpu.PrefetchScalarGridSpec(
            num_scalar_prefetch=0,
            grid=(B, n_s),
            in_specs=[
                pl.BlockSpec((None, TS, D), lambda b, s: (b, s, 0)),               # x tile
                pl.BlockSpec((None, num_heads, Se, dk), lambda b, s: (b, 0, 0, 0)),  # K heads
                pl.BlockSpec((None, num_heads, Se, dk), lambda b, s: (b, 0, 0, 0)),  # V heads
                const_spec((num_heads, D, dk)),                 # Wq (head-major)
                const_spec((num_heads, 1, dk)),                 # bq (head-major)
                const_spec((D, D)),                             # Wo
                const_spec((1, D)),                             # bo
                const_spec((1, D)), const_spec((1, D)),         # LN2 gamma / beta
                const_spec((D, Dff)), const_spec((1, Dff)),     # W1, b1
                const_spec((Dff, D)), const_spec((1, D)),       # W2, b2
                const_spec((1, D)), const_spec((1, D)),         # LN3 gamma / beta
            ],
            out_specs=pl.BlockSpec((None, TS, D), lambda b, s: (b, s, 0)),
        ),
        compiler_params=pltpu.CompilerParams(
            # K/V are precomputed outside the kernel, so both grid axes are
            # fully independent -> megacore can shard either (matters on v7x).
            dimension_semantics=("parallel", "parallel"),
            vmem_limit_bytes=int(vmem_limit),
        ),
        cost_estimate=cost,
    )(x, k_h, v_h,
      wq_h, bq_h, wo_c, params["bo"],
      params["ln2_g"], params["ln2_b"],
      w1_c, params["b1"], w2_c, params["b2"],
      params["ln3_g"], params["ln3_b"])


# ---------------------------------------------------------------------------
# Pure-JAX f32 reference (PyTorch-module semantics, for correctness check)
# ---------------------------------------------------------------------------
def decoder_layer_ref(x, enc, p, num_heads):
    B, S, D = x.shape
    dk = D // num_heads

    def heads(t):  # (B, L, D) -> (B, H, L, dk)
        return t.reshape(B, -1, num_heads, dk).transpose(0, 2, 1, 3)

    q = heads(x @ p["wq"] + p["bq"])
    k = heads(enc @ p["wk"] + p["bk"])
    v = heads(enc @ p["wv"] + p["bv"])
    s = jnp.einsum("bhqd,bhkd->bhqk", q, k) / jnp.sqrt(jnp.float32(dk))
    a = jax.nn.softmax(s, axis=-1)
    ctx = jnp.einsum("bhqk,bhkd->bhqd", a, v).transpose(0, 2, 1, 3).reshape(B, S, D)
    attn_out = ctx @ p["wo"] + p["bo"]

    def ln(y, g, b):
        m = jnp.mean(y, axis=-1, keepdims=True)
        vv = jnp.mean((y - m) ** 2, axis=-1, keepdims=True)
        return (y - m) * jax.lax.rsqrt(vv + LN_EPS) * g + b

    x = ln(x + attn_out, p["ln2_g"], p["ln2_b"])
    f = jnp.maximum(x @ p["w1"] + p["b1"], 0.0) @ p["w2"] + p["b2"]
    x = ln(x + f, p["ln3_g"], p["ln3_b"])
    return x


# ---------------------------------------------------------------------------
if __name__ == "__main__":
    # D = 128 keeps the output store lane-dense (multiple of 128 lanes).
    B, S, Se, D, H, Dff = 2, 8, 8, 128, 4, 256

    key = jax.random.PRNGKey(0)
    ks = jax.random.split(key, 14)
    init = lambda k, shp: (0.05 * jax.random.normal(k, shp)).astype(jnp.float32)

    params = {
        "wq": init(ks[0], (D, D)), "bq": init(ks[1], (1, D)),
        "wk": init(ks[2], (D, D)), "bk": init(ks[3], (1, D)),
        "wv": init(ks[4], (D, D)), "bv": init(ks[5], (1, D)),
        "wo": init(ks[6], (D, D)), "bo": init(ks[7], (1, D)),
        "w1": init(ks[8], (D, Dff)), "b1": init(ks[9], (1, Dff)),
        "w2": init(ks[10], (Dff, D)), "b2": init(ks[11], (1, D)),
        "ln2_g": jnp.ones((1, D), jnp.float32), "ln2_b": jnp.zeros((1, D), jnp.float32),
        "ln3_g": jnp.ones((1, D), jnp.float32), "ln3_b": jnp.zeros((1, D), jnp.float32),
    }

    x = jax.random.normal(ks[12], (B, S, D), jnp.float32)
    enc = jax.random.normal(ks[13], (B, Se, D), jnp.float32)

    out = jax.block_until_ready(decoder_layer(x, enc, params, H))
    ref = jax.block_until_ready(decoder_layer_ref(x, enc, params, H))

    assert out.shape == (B, S, D)
    # tolerance relaxed vs the f32-exact reference: matmul operands run in
    # bf16 (f32 accumulation) and the softmax denominator uses the EUP
    # approximate reciprocal (pl.reciprocal(approx=True)).
    max_err = float(jnp.max(jnp.abs(out - ref)))
    assert jnp.allclose(out, ref, atol=5e-2, rtol=5e-2), max_err
    print("KERNEL_OK")
</pallas_src>

<mosaic_0001>
module attributes {stable_mosaic.version = 11 : i64} {
  func.func @decoder_layer_kernel(%arg0: i32, %arg1: i32, %arg2: memref<1x8x128xf32, #tpu.memory_space<vmem>>, %arg3: memref<1x4x8x32xbf16, #tpu.memory_space<vmem>>, %arg4: memref<1x4x8x32xbf16, #tpu.memory_space<vmem>>, %arg5: memref<4x128x32xbf16, #tpu.memory_space<vmem>>, %arg6: memref<4x1x32xf32, #tpu.memory_space<vmem>>, %arg7: memref<128x128xbf16, #tpu.memory_space<vmem>>, %arg8: memref<1x128xf32, #tpu.memory_space<vmem>>, %arg9: memref<1x128xf32, #tpu.memory_space<vmem>>, %arg10: memref<1x128xf32, #tpu.memory_space<vmem>>, %arg11: memref<128x256xbf16, #tpu.memory_space<vmem>>, %arg12: memref<1x256xf32, #tpu.memory_space<vmem>>, %arg13: memref<256x128xbf16, #tpu.memory_space<vmem>>, %arg14: memref<1x128xf32, #tpu.memory_space<vmem>>, %arg15: memref<1x128xf32, #tpu.memory_space<vmem>>, %arg16: memref<1x128xf32, #tpu.memory_space<vmem>>, %arg17: memref<1x8x128xf32, #tpu.memory_space<vmem>>) attributes {dimension_semantics = [#tpu.dimension_semantics<parallel>, #tpu.dimension_semantics<parallel>], iteration_bounds = array<i64: 2, 1>, scalar_prefetch = 0 : i64, scratch_operands = 0 : i64, tpu.core_type = #tpu.core_type<tc>, window_params = [{transform_indices = @transform_0, window_bounds = array<i64: 1, 8, 128>}, {transform_indices = @transform_1, window_bounds = array<i64: 1, 4, 8, 32>}, {transform_indices = @transform_2, window_bounds = array<i64: 1, 4, 8, 32>}, {pipeline_mode = #tpu.pipeline_mode<synchronous>, transform_indices = @transform_3, window_bounds = array<i64: 4, 128, 32>}, {pipeline_mode = #tpu.pipeline_mode<synchronous>, transform_indices = @transform_4, window_bounds = array<i64: 4, 1, 32>}, {pipeline_mode = #tpu.pipeline_mode<synchronous>, transform_indices = @transform_5, window_bounds = array<i64: 128, 128>}, {pipeline_mode = #tpu.pipeline_mode<synchronous>, transform_indices = @transform_6, window_bounds = array<i64: 1, 128>}, {pipeline_mode = #tpu.pipeline_mode<synchronous>, transform_indices = @transform_7, window_bounds = array<i64: 1, 128>}, {pipeline_mode = #tpu.pipeline_mode<synchronous>, transform_indices = @transform_8, window_bounds = array<i64: 1, 128>}, {pipeline_mode = #tpu.pipeline_mode<synchronous>, transform_indices = @transform_9, window_bounds = array<i64: 128, 256>}, {pipeline_mode = #tpu.pipeline_mode<synchronous>, transform_indices = @transform_10, window_bounds = array<i64: 1, 256>}, {pipeline_mode = #tpu.pipeline_mode<synchronous>, transform_indices = @transform_11, window_bounds = array<i64: 256, 128>}, {pipeline_mode = #tpu.pipeline_mode<synchronous>, transform_indices = @transform_12, window_bounds = array<i64: 1, 128>}, {pipeline_mode = #tpu.pipeline_mode<synchronous>, transform_indices = @transform_13, window_bounds = array<i64: 1, 128>}, {pipeline_mode = #tpu.pipeline_mode<synchronous>, transform_indices = @transform_14, window_bounds = array<i64: 1, 128>}, {transform_indices = @transform_15, window_bounds = array<i64: 1, 8, 128>}]} {
    %c0 = arith.constant 0 : index
    %c0_0 = arith.constant 0 : index
    %c0_1 = arith.constant 0 : index
    %0 = vector.load %arg2[%c0, %c0_0, %c0_1] : memref<1x8x128xf32, #tpu.memory_space<vmem>>, vector<1x8x128xf32>
    %1 = vector.shape_cast %0 : vector<1x8x128xf32> to vector<8x128xf32>
    %2 = arith.truncf %1 : vector<8x128xf32> to vector<8x128xbf16>
    %c0_2 = arith.constant 0 : index
    %c0_3 = arith.constant 0 : index
    %c0_4 = arith.constant 0 : index
    %3 = vector.load %arg5[%c0_2, %c0_3, %c0_4] : memref<4x128x32xbf16, #tpu.memory_space<vmem>>, vector<1x128x32xbf16>
    %4 = vector.shape_cast %3 : vector<1x128x32xbf16> to vector<128x32xbf16>
    %cst = arith.constant dense<0.000000e+00> : vector<8x32xf32>
    %5 = tpu.matmul %2, %4, %cst {dimension_numbers = #tpu.dot_dimension_numbers<[1], [0], [0], [1], [0, 0, 1, 1], [], []>} : vector<8x128xbf16>, vector<128x32xbf16>, vector<8x32xf32> -> vector<8x32xf32>
    %c0_5 = arith.constant 0 : index
    %c0_6 = arith.constant 0 : index
    %c0_7 = arith.constant 0 : index
    %6 = vector.load %arg6[%c0_5, %c0_6, %c0_7] : memref<4x1x32xf32, #tpu.memory_space<vmem>>, vector<1x1x32xf32>
    %7 = vector.shape_cast %6 : vector<1x1x32xf32> to vector<1x32xf32>
    %8 = vector.broadcast %7 : vector<1x32xf32> to vector<8x32xf32>
    %9 = arith.addf %5, %8 : vector<8x32xf32>
    %cst_8 = arith.constant 0.176776692 : f32
    %10 = vector.broadcast %cst_8 : f32 to vector<8x32xf32>
    %11 = arith.mulf %9, %10 : vector<8x32xf32>
    %c0_9 = arith.constant 0 : index
    %c0_10 = arith.constant 0 : index
    %c0_11 = arith.constant 0 : index
    %c0_12 = arith.constant 0 : index
    %12 = vector.load %arg3[%c0_9, %c0_10, %c0_11, %c0_12] : memref<1x4x8x32xbf16, #tpu.memory_space<vmem>>, vector<1x1x8x32xbf16>
    %13 = vector.shape_cast %12 : vector<1x1x8x32xbf16> to vector<8x32xbf16>
    %c0_13 = arith.constant 0 : index
    %c0_14 = arith.constant 0 : index
    %c0_15 = arith.constant 0 : index
    %c0_16 = arith.constant 0 : index
    %14 = vector.load %arg4[%c0_13, %c0_14, %c0_15, %c0_16] : memref<1x4x8x32xbf16, #tpu.memory_space<vmem>>, vector<1x1x8x32xbf16>
    %15 = vector.shape_cast %14 : vector<1x1x8x32xbf16> to vector<8x32xbf16>
    %16 = arith.truncf %11 : vector<8x32xf32> to vector<8x32xbf16>
    %cst_17 = arith.constant dense<0.000000e+00> : vector<8x8xf32>
    %17 = tpu.matmul %16, %13, %cst_17 {dimension_numbers = #tpu.dot_dimension_numbers<[1], [1], [0], [0], [0, 0, 1, 0], [], []>} : vector<8x32xbf16>, vector<8x32xbf16>, vector<8x8xf32> -> vector<8x8xf32>
    %cst_18 = arith.constant dense<0xFF800000> : vector<8xf32>
    %18 = vector.multi_reduction <maximumf>, %17, %cst_18 [1] : vector<8x8xf32> to vector<8xf32>
    %19 = vector.shape_cast %18 : vector<8xf32> to vector<8x1xf32>
    %20 = vector.broadcast %19 : vector<8x1xf32> to vector<8x8xf32>
    %21 = arith.subf %17, %20 : vector<8x8xf32>
    %22 = math.exp %21 : vector<8x8xf32>
    %cst_19 = arith.constant dense<0.000000e+00> : vector<8xf32>
    %23 = vector.multi_reduction <add>, %22, %cst_19 [1] : vector<8x8xf32> to vector<8xf32>
    %24 = vector.shape_cast %23 : vector<8xf32> to vector<8x1xf32>
    %25 = tpu.reciprocal %24 {approx = true} : vector<8x1xf32> -> vector<8x1xf32>
    %26 = vector.broadcast %25 : vector<8x1xf32> to vector<8x8xf32>
    %27 = arith.mulf %22, %26 : vector<8x8xf32>
    %28 = arith.truncf %27 : vector<8x8xf32> to vector<8x8xbf16>
    %cst_20 = arith.constant dense<0.000000e+00> : vector<8x32xf32>
    %29 = tpu.matmul %28, %15, %cst_20 {dimension_numbers = #tpu.dot_dimension_numbers<[1], [0], [0], [1], [0, 0, 1, 1], [], []>} : vector<8x8xbf16>, vector<8x32xbf16>, vector<8x32xf32> -> vector<8x32xf32>
    %c1 = arith.constant 1 : index
    %c0_21 = arith.constant 0 : index
    %c0_22 = arith.constant 0 : index
    %30 = vector.load %arg5[%c1, %c0_21, %c0_22] : memref<4x128x32xbf16, #tpu.memory_space<vmem>>, vector<1x128x32xbf16>
    %31 = vector.shape_cast %30 : vector<1x128x32xbf16> to vector<128x32xbf16>
    %cst_23 = arith.constant dense<0.000000e+00> : vector<8x32xf32>
    %32 = tpu.matmul %2, %31, %cst_23 {dimension_numbers = #tpu.dot_dimension_numbers<[1], [0], [0], [1], [0, 0, 1, 1], [], []>} : vector<8x128xbf16>, vector<128x32xbf16>, vector<8x32xf32> -> vector<8x32xf32>
    %c1_24 = arith.constant 1 : index
    %c0_25 = arith.constant 0 : index
    %c0_26 = arith.constant 0 : index
    %33 = vector.load %arg6[%c1_24, %c0_25, %c0_26] : memref<4x1x32xf32, #tpu.memory_space<vmem>>, vector<1x1x32xf32>
    %34 = vector.shape_cast %33 : vector<1x1x32xf32> to vector<1x32xf32>
    %35 = vector.broadcast %34 : vector<1x32xf32> to vector<8x32xf32>
    %36 = arith.addf %32, %35 : vector<8x32xf32>
    %cst_27 = arith.constant 0.176776692 : f32
    %37 = vector.broadcast %cst_27 : f32 to vector<8x32xf32>
    %38 = arith.mulf %36, %37 : vector<8x32xf32>
    %c0_28 = arith.constant 0 : index
    %c1_29 = arith.constant 1 : index
    %c0_30 = arith.constant 0 : index
    %c0_31 = arith.constant 0 : index
    %39 = vector.load %arg3[%c0_28, %c1_29, %c0_30, %c0_31] : memref<1x4x8x32xbf16, #tpu.memory_space<vmem>>, vector<1x1x8x32xbf16>
    %40 = vector.shape_cast %39 : vector<1x1x8x32xbf16> to vector<8x32xbf16>
    %c0_32 = arith.constant 0 : index
    %c1_33 = arith.constant 1 : index
    %c0_34 = arith.constant 0 : index
    %c0_35 = arith.constant 0 : index
    %41 = vector.load %arg4[%c0_32, %c1_33, %c0_34, %c0_35] : memref<1x4x8x32xbf16, #tpu.memory_space<vmem>>, vector<1x1x8x32xbf16>
    %42 = vector.shape_cast %41 : vector<1x1x8x32xbf16> to vector<8x32xbf16>
    %43 = arith.truncf %38 : vector<8x32xf32> to vector<8x32xbf16>
    %cst_36 = arith.constant dense<0.000000e+00> : vector<8x8xf32>
    %44 = tpu.matmul %43, %40, %cst_36 {dimension_numbers = #tpu.dot_dimension_numbers<[1], [1], [0], [0], [0, 0, 1, 0], [], []>} : vector<8x32xbf16>, vector<8x32xbf16>, vector<8x8xf32> -> vector<8x8xf32>
    %cst_37 = arith.constant dense<0xFF800000> : vector<8xf32>
    %45 = vector.multi_reduction <maximumf>, %44, %cst_37 [1] : vector<8x8xf32> to vector<8xf32>
    %46 = vector.shape_cast %45 : vector<8xf32> to vector<8x1xf32>
    %47 = vector.broadcast %46 : vector<8x1xf32> to vector<8x8xf32>
    %48 = arith.subf %44, %47 : vector<8x8xf32>
    %49 = math.exp %48 : vector<8x8xf32>
    %cst_38 = arith.constant dense<0.000000e+00> : vector<8xf32>
    %50 = vector.multi_reduction <add>, %49, %cst_38 [1] : vector<8x8xf32> to vector<8xf32>
    %51 = vector.shape_cast %50 : vector<8xf32> to vector<8x1xf32>
    %52 = tpu.reciprocal %51 {approx = true} : vector<8x1xf32> -> vector<8x1xf32>
    %53 = vector.broadcast %52 : vector<8x1xf32> to vector<8x8xf32>
    %54 = arith.mulf %49, %53 : vector<8x8xf32>
    %55 = arith.truncf %54 : vector<8x8xf32> to vector<8x8xbf16>
    %cst_39 = arith.constant dense<0.000000e+00> : vector<8x32xf32>
    %56 = tpu.matmul %55, %42, %cst_39 {dimension_numbers = #tpu.dot_dimension_numbers<[1], [0], [0], [1], [0, 0, 1, 1], [], []>} : vector<8x8xbf16>, vector<8x32xbf16>, vector<8x32xf32> -> vector<8x32xf32>
    %c2 = arith.constant 2 : index
    %c0_40 = arith.constant 0 : index
    %c0_41 = arith.constant 0 : index
    %57 = vector.load %arg5[%c2, %c0_40, %c0_41] : memref<4x128x32xbf16, #tpu.memory_space<vmem>>, vector<1x128x32xbf16>
    %58 = vector.shape_cast %57 : vector<1x128x32xbf16> to vector<128x32xbf16>
    %cst_42 = arith.constant dense<0.000000e+00> : vector<8x32xf32>
    %59 = tpu.matmul %2, %58, %cst_42 {dimension_numbers = #tpu.dot_dimension_numbers<[1], [0], [0], [1], [0, 0, 1, 1], [], []>} : vector<8x128xbf16>, vector<128x32xbf16>, vector<8x32xf32> -> vector<8x32xf32>
    %c2_43 = arith.constant 2 : index
    %c0_44 = arith.constant 0 : index
    %c0_45 = arith.constant 0 : index
    %60 = vector.load %arg6[%c2_43, %c0_44, %c0_45] : memref<4x1x32xf32, #tpu.memory_space<vmem>>, vector<1x1x32xf32>
    %61 = vector.shape_cast %60 : vector<1x1x32xf32> to vector<1x32xf32>
    %62 = vector.broadcast %61 : vector<1x32xf32> to vector<8x32xf32>
    %63 = arith.addf %59, %62 : vector<8x32xf32>
    %cst_46 = arith.constant 0.176776692 : f32
    %64 = vector.broadcast %cst_46 : f32 to vector<8x32xf32>
    %65 = arith.mulf %63, %64 : vector<8x32xf32>
    %c0_47 = arith.constant 0 : index
    %c2_48 = arith.constant 2 : index
    %c0_49 = arith.constant 0 : index
    %c0_50 = arith.constant 0 : index
    %66 = vector.load %arg3[%c0_47, %c2_48, %c0_49, %c0_50] : memref<1x4x8x32xbf16, #tpu.memory_space<vmem>>, vector<1x1x8x32xbf16>
    %67 = vector.shape_cast %66 : vector<1x1x8x32xbf16> to vector<8x32xbf16>
    %c0_51 = arith.constant 0 : index
    %c2_52 = arith.constant 2 : index
    %c0_53 = arith.constant 0 : index
    %c0_54 = arith.constant 0 : index
    %68 = vector.load %arg4[%c0_51, %c2_52, %c0_53, %c0_54] : memref<1x4x8x32xbf16, #tpu.memory_space<vmem>>, vector<1x1x8x32xbf16>
    %69 = vector.shape_cast %68 : vector<1x1x8x32xbf16> to vector<8x32xbf16>
    %70 = arith.truncf %65 : vector<8x32xf32> to vector<8x32xbf16>
    %cst_55 = arith.constant dense<0.000000e+00> : vector<8x8xf32>
    %71 = tpu.matmul %70, %67, %cst_55 {dimension_numbers = #tpu.dot_dimension_numbers<[1], [1], [0], [0], [0, 0, 1, 0], [], []>} : vector<8x32xbf16>, vector<8x32xbf16>, vector<8x8xf32> -> vector<8x8xf32>
    %cst_56 = arith.constant dense<0xFF800000> : vector<8xf32>
    %72 = vector.multi_reduction <maximumf>, %71, %cst_56 [1] : vector<8x8xf32> to vector<8xf32>
    %73 = vector.shape_cast %72 : vector<8xf32> to vector<8x1xf32>
    %74 = vector.broadcast %73 : vector<8x1xf32> to vector<8x8xf32>
    %75 = arith.subf %71, %74 : vector<8x8xf32>
    %76 = math.exp %75 : vector<8x8xf32>
    %cst_57 = arith.constant dense<0.000000e+00> : vector<8xf32>
    %77 = vector.multi_reduction <add>, %76, %cst_57 [1] : vector<8x8xf32> to vector<8xf32>
    %78 = vector.shape_cast %77 : vector<8xf32> to vector<8x1xf32>
    %79 = tpu.reciprocal %78 {approx = true} : vector<8x1xf32> -> vector<8x1xf32>
    %80 = vector.broadcast %79 : vector<8x1xf32> to vector<8x8xf32>
    %81 = arith.mulf %76, %80 : vector<8x8xf32>
    %82 = arith.truncf %81 : vector<8x8xf32> to vector<8x8xbf16>
    %cst_58 = arith.constant dense<0.000000e+00> : vector<8x32xf32>
    %83 = tpu.matmul %82, %69, %cst_58 {dimension_numbers = #tpu.dot_dimension_numbers<[1], [0], [0], [1], [0, 0, 1, 1], [], []>} : vector<8x8xbf16>, vector<8x32xbf16>, vector<8x32xf32> -> vector<8x32xf32>
    %c3 = arith.constant 3 : index
    %c0_59 = arith.constant 0 : index
    %c0_60 = arith.constant 0 : index
    %84 = vector.load %arg5[%c3, %c0_59, %c0_60] : memref<4x128x32xbf16, #tpu.memory_space<vmem>>, vector<1x128x32xbf16>
    %85 = vector.shape_cast %84 : vector<1x128x32xbf16> to vector<128x32xbf16>
    %cst_61 = arith.constant dense<0.000000e+00> : vector<8x32xf32>
    %86 = tpu.matmul %2, %85, %cst_61 {dimension_numbers = #tpu.dot_dimension_numbers<[1], [0], [0], [1], [0, 0, 1, 1], [], []>} : vector<8x128xbf16>, vector<128x32xbf16>, vector<8x32xf32> -> vector<8x32xf32>
    %c3_62 = arith.constant 3 : index
    %c0_63 = arith.constant 0 : index
    %c0_64 = arith.constant 0 : index
    %87 = vector.load %arg6[%c3_62, %c0_63, %c0_64] : memref<4x1x32xf32, #tpu.memory_space<vmem>>, vector<1x1x32xf32>
    %88 = vector.shape_cast %87 : vector<1x1x32xf32> to vector<1x32xf32>
    %89 = vector.broadcast %88 : vector<1x32xf32> to vector<8x32xf32>
    %90 = arith.addf %86, %89 : vector<8x32xf32>
    %cst_65 = arith.constant 0.176776692 : f32
    %91 = vector.broadcast %cst_65 : f32 to vector<8x32xf32>
    %92 = arith.mulf %90, %91 : vector<8x32xf32>
    %c0_66 = arith.constant 0 : index
    %c3_67 = arith.constant 3 : index
    %c0_68 = arith.constant 0 : index
    %c0_69 = arith.constant 0 : index
    %93 = vector.load %arg3[%c0_66, %c3_67, %c0_68, %c0_69] : memref<1x4x8x32xbf16, #tpu.memory_space<vmem>>, vector<1x1x8x32xbf16>
    %94 = vector.shape_cast %93 : vector<1x1x8x32xbf16> to vector<8x32xbf16>
    %c0_70 = arith.constant 0 : index
    %c3_71 = arith.constant 3 : index
    %c0_72 = arith.constant 0 : index
    %c0_73 = arith.constant 0 : index
    %95 = vector.load %arg4[%c0_70, %c3_71, %c0_72, %c0_73] : memref<1x4x8x32xbf16, #tpu.memory_space<vmem>>, vector<1x1x8x32xbf16>
    %96 = vector.shape_cast %95 : vector<1x1x8x32xbf16> to vector<8x32xbf16>
    %97 = arith.truncf %92 : vector<8x32xf32> to vector<8x32xbf16>
    %cst_74 = arith.constant dense<0.000000e+00> : vector<8x8xf32>
    %98 = tpu.matmul %97, %94, %cst_74 {dimension_numbers = #tpu.dot_dimension_numbers<[1], [1], [0], [0], [0, 0, 1, 0], [], []>} : vector<8x32xbf16>, vector<8x32xbf16>, vector<8x8xf32> -> vector<8x8xf32>
    %cst_75 = arith.constant dense<0xFF800000> : vector<8xf32>
    %99 = vector.multi_reduction <maximumf>, %98, %cst_75 [1] : vector<8x8xf32> to vector<8xf32>
    %100 = vector.shape_cast %99 : vector<8xf32> to vector<8x1xf32>
    %101 = vector.broadcast %100 : vector<8x1xf32> to vector<8x8xf32>
    %102 = arith.subf %98, %101 : vector<8x8xf32>
    %103 = math.exp %102 : vector<8x8xf32>
    %cst_76 = arith.constant dense<0.000000e+00> : vector<8xf32>
    %104 = vector.multi_reduction <add>, %103, %cst_76 [1] : vector<8x8xf32> to vector<8xf32>
    %105 = vector.shape_cast %104 : vector<8xf32> to vector<8x1xf32>
    %106 = tpu.reciprocal %105 {approx = true} : vector<8x1xf32> -> vector<8x1xf32>
    %107 = vector.broadcast %106 : vector<8x1xf32> to vector<8x8xf32>
    %108 = arith.mulf %103, %107 : vector<8x8xf32>
    %109 = arith.truncf %108 : vector<8x8xf32> to vector<8x8xbf16>
    %cst_77 = arith.constant dense<0.000000e+00> : vector<8x32xf32>
    %110 = tpu.matmul %109, %96, %cst_77 {dimension_numbers = #tpu.dot_dimension_numbers<[1], [0], [0], [1], [0, 0, 1, 1], [], []>} : vector<8x8xbf16>, vector<8x32xbf16>, vector<8x32xf32> -> vector<8x32xf32>
    %111 = tpu.concatenate %29, %56, %83, %110 in 1 : vector<8x32xf32>, vector<8x32xf32>, vector<8x32xf32>, vector<8x32xf32> -> vector<8x128xf32>
    %112 = arith.truncf %111 : vector<8x128xf32> to vector<8x128xbf16>
    %c0_78 = arith.constant 0 : index
    %c0_79 = arith.constant 0 : index
    %113 = vector.load %arg7[%c0_78, %c0_79] : memref<128x128xbf16, #tpu.memory_space<vmem>>, vector<128x128xbf16>
    %cst_80 = arith.constant dense<0.000000e+00> : vector<8x128xf32>
    %114 = tpu.matmul %112, %113, %cst_80 {dimension_numbers = #tpu.dot_dimension_numbers<[1], [0], [0], [1], [0, 0, 1, 1], [], []>} : vector<8x128xbf16>, vector<128x128xbf16>, vector<8x128xf32> -> vector<8x128xf32>
    %c0_81 = arith.constant 0 : index
    %c0_82 = arith.constant 0 : index
    %115 = vector.load %arg8[%c0_81, %c0_82] : memref<1x128xf32, #tpu.memory_space<vmem>>, vector<1x128xf32>
    %116 = vector.broadcast %115 : vector<1x128xf32> to vector<8x128xf32>
    %117 = arith.addf %114, %116 : vector<8x128xf32>
    %118 = arith.addf %1, %117 : vector<8x128xf32>
    %c0_83 = arith.constant 0 : index
    %c0_84 = arith.constant 0 : index
    %119 = vector.load %arg9[%c0_83, %c0_84] : memref<1x128xf32, #tpu.memory_space<vmem>>, vector<1x128xf32>
    %c0_85 = arith.constant 0 : index
    %c0_86 = arith.constant 0 : index
    %120 = vector.load %arg10[%c0_85, %c0_86] : memref<1x128xf32, #tpu.memory_space<vmem>>, vector<1x128xf32>
    %cst_87 = arith.constant dense<0.000000e+00> : vector<8xf32>
    %121 = vector.multi_reduction <add>, %118, %cst_87 [1] : vector<8x128xf32> to vector<8xf32>
    %122 = vector.shape_cast %121 : vector<8xf32> to vector<8x1xf32>
    %cst_88 = arith.constant 1.280000e+02 : f32
    %123 = vector.broadcast %cst_88 : f32 to vector<8x1xf32>
    %124 = arith.divf %122, %123 : vector<8x1xf32>
    %125 = arith.mulf %118, %118 : vector<8x128xf32>
    %cst_89 = arith.constant dense<0.000000e+00> : vector<8xf32>
    %126 = vector.multi_reduction <add>, %125, %cst_89 [1] : vector<8x128xf32> to vector<8xf32>
    %127 = vector.shape_cast %126 : vector<8xf32> to vector<8x1xf32>
    %cst_90 = arith.constant 1.280000e+02 : f32
    %128 = vector.broadcast %cst_90 : f32 to vector<8x1xf32>
    %129 = arith.divf %127, %128 : vector<8x1xf32>
    %130 = arith.mulf %124, %124 : vector<8x1xf32>
    %131 = arith.subf %129, %130 : vector<8x1xf32>
    %132 = vector.broadcast %124 : vector<8x1xf32> to vector<8x128xf32>
    %133 = arith.subf %118, %132 : vector<8x128xf32>
    %cst_91 = arith.constant 9.99999974E-6 : f32
    %134 = vector.broadcast %cst_91 : f32 to vector<8x1xf32>
    %135 = arith.addf %131, %134 : vector<8x1xf32>
    %136 = math.rsqrt %135 : vector<8x1xf32>
    %137 = vector.broadcast %136 : vector<8x1xf32> to vector<8x128xf32>
    %138 = arith.mulf %133, %137 : vector<8x128xf32>
    %139 = vector.broadcast %119 : vector<1x128xf32> to vector<8x128xf32>
    %140 = arith.mulf %138, %139 : vector<8x128xf32>
    %141 = vector.broadcast %120 : vector<1x128xf32> to vector<8x128xf32>
    %142 = arith.addf %140, %141 : vector<8x128xf32>
    %143 = arith.truncf %142 : vector<8x128xf32> to vector<8x128xbf16>
    %c0_92 = arith.constant 0 : index
    %c0_93 = arith.constant 0 : index
    %144 = vector.load %arg11[%c0_92, %c0_93] : memref<128x256xbf16, #tpu.memory_space<vmem>>, vector<128x256xbf16>
    %cst_94 = arith.constant dense<0.000000e+00> : vector<8x256xf32>
    %145 = tpu.matmul %143, %144, %cst_94 {dimension_numbers = #tpu.dot_dimension_numbers<[1], [0], [0], [1], [0, 0, 1, 1], [], []>} : vector<8x128xbf16>, vector<128x256xbf16>, vector<8x256xf32> -> vector<8x256xf32>
    %c0_95 = arith.constant 0 : index
    %c0_96 = arith.constant 0 : index
    %146 = vector.load %arg12[%c0_95, %c0_96] : memref<1x256xf32, #tpu.memory_space<vmem>>, vector<1x256xf32>
    %147 = vector.broadcast %146 : vector<1x256xf32> to vector<8x256xf32>
    %148 = arith.addf %145, %147 : vector<8x256xf32>
    %cst_97 = arith.constant 0.000000e+00 : f32
    %149 = vector.broadcast %cst_97 : f32 to vector<8x256xf32>
    %150 = arith.maximumf %148, %149 : vector<8x256xf32>
    %151 = arith.truncf %150 : vector<8x256xf32> to vector<8x256xbf16>
    %c0_98 = arith.constant 0 : index
    %c0_99 = arith.constant 0 : index
    %152 = vector.load %arg13[%c0_98, %c0_99] : memref<256x128xbf16, #tpu.memory_space<vmem>>, vector<256x128xbf16>
    %cst_100 = arith.constant dense<0.000000e+00> : vector<8x128xf32>
    %153 = tpu.matmul %151, %152, %cst_100 {dimension_numbers = #tpu.dot_dimension_numbers<[1], [0], [0], [1], [0, 0, 1, 1], [], []>} : vector<8x256xbf16>, vector<256x128xbf16>, vector<8x128xf32> -> vector<8x128xf32>
    %c0_101 = arith.constant 0 : index
    %c0_102 = arith.constant 0 : index
    %154 = vector.load %arg14[%c0_101, %c0_102] : memref<1x128xf32, #tpu.memory_space<vmem>>, vector<1x128xf32>
    %155 = vector.broadcast %154 : vector<1x128xf32> to vector<8x128xf32>
    %156 = arith.addf %153, %155 : vector<8x128xf32>
    %157 = arith.addf %142, %156 : vector<8x128xf32>
    %c0_103 = arith.constant 0 : index
    %c0_104 = arith.constant 0 : index
    %158 = vector.load %arg15[%c0_103, %c0_104] : memref<1x128xf32, #tpu.memory_space<vmem>>, vector<1x128xf32>
    %c0_105 = arith.constant 0 : index
    %c0_106 = arith.constant 0 : index
    %159 = vector.load %arg16[%c0_105, %c0_106] : memref<1x128xf32, #tpu.memory_space<vmem>>, vector<1x128xf32>
    %cst_107 = arith.constant dense<0.000000e+00> : vector<8xf32>
    %160 = vector.multi_reduction <add>, %157, %cst_107 [1] : vector<8x128xf32> to vector<8xf32>
    %161 = vector.shape_cast %160 : vector<8xf32> to vector<8x1xf32>
    %cst_108 = arith.constant 1.280000e+02 : f32
    %162 = vector.broadcast %cst_108 : f32 to vector<8x1xf32>
    %163 = arith.divf %161, %162 : vector<8x1xf32>
    %164 = arith.mulf %157, %157 : vector<8x128xf32>
    %cst_109 = arith.constant dense<0.000000e+00> : vector<8xf32>
    %165 = vector.multi_reduction <add>, %164, %cst_109 [1] : vector<8x128xf32> to vector<8xf32>
    %166 = vector.shape_cast %165 : vector<8xf32> to vector<8x1xf32>
    %cst_110 = arith.constant 1.280000e+02 : f32
    %167 = vector.broadcast %cst_110 : f32 to vector<8x1xf32>
    %168 = arith.divf %166, %167 : vector<8x1xf32>
    %169 = arith.mulf %163, %163 : vector<8x1xf32>
    %170 = arith.subf %168, %169 : vector<8x1xf32>
    %171 = vector.broadcast %163 : vector<8x1xf32> to vector<8x128xf32>
    %172 = arith.subf %157, %171 : vector<8x128xf32>
    %cst_111 = arith.constant 9.99999974E-6 : f32
    %173 = vector.broadcast %cst_111 : f32 to vector<8x1xf32>
    %174 = arith.addf %170, %173 : vector<8x1xf32>
    %175 = math.rsqrt %174 : vector<8x1xf32>
    %176 = vector.broadcast %175 : vector<8x1xf32> to vector<8x128xf32>
    %177 = arith.mulf %172, %176 : vector<8x128xf32>
    %178 = vector.broadcast %158 : vector<1x128xf32> to vector<8x128xf32>
    %179 = arith.mulf %177, %178 : vector<8x128xf32>
    %180 = vector.broadcast %159 : vector<1x128xf32> to vector<8x128xf32>
    %181 = arith.addf %179, %180 : vector<8x128xf32>
    %c0_112 = arith.constant 0 : index
    %c0_113 = arith.constant 0 : index
    %c0_114 = arith.constant 0 : index
    %182 = vector.load %arg17[%c0_112, %c0_113, %c0_114] : memref<1x8x128xf32, #tpu.memory_space<vmem>>, vector<1x8x128xf32>
    %183 = vector.shape_cast %182 : vector<1x8x128xf32> to vector<8x128xf32>
    %184 = vector.shape_cast %181 : vector<8x128xf32> to vector<1x8x128xf32>
    tpu.vector_store %arg17[%c0_112, %c0_113, %c0_114], %184 {strides = array<i32>} : memref<1x8x128xf32, #tpu.memory_space<vmem>>, vector<1x8x128xf32>,
    return
  }
  func.func @transform_0(%arg0: i32, %arg1: i32) -> (i32, i32, i32) {
    %c0_i32 = arith.constant 0 : i32
    %c0_i32_0 = arith.constant 0 : i32
    return %arg0, %arg1, %c0_i32 : i32, i32, i32
  }
  func.func @transform_1(%arg0: i32, %arg1: i32) -> (i32, i32, i32, i32) {
    %c0_i32 = arith.constant 0 : i32
    %c0_i32_0 = arith.constant 0 : i32
    %c0_i32_1 = arith.constant 0 : i32
    %c0_i32_2 = arith.constant 0 : i32
    return %arg0, %c0_i32, %c0_i32_0, %c0_i32_1 : i32, i32, i32, i32
  }
  func.func @transform_2(%arg0: i32, %arg1: i32) -> (i32, i32, i32, i32) {
    %c0_i32 = arith.constant 0 : i32
    %c0_i32_0 = arith.constant 0 : i32
    %c0_i32_1 = arith.constant 0 : i32
    %c0_i32_2 = arith.constant 0 : i32
    return %arg0, %c0_i32, %c0_i32_0, %c0_i32_1 : i32, i32, i32, i32
  }
  func.func @transform_3(%arg0: i32, %arg1: i32) -> (i32, i32, i32) {
    %c0_i32 = arith.constant 0 : i32
    %c0_i32_0 = arith.constant 0 : i32
    %c0_i32_1 = arith.constant 0 : i32
    %c0_i32_2 = arith.constant 0 : i32
    return %c0_i32, %c0_i32_0, %c0_i32_1 : i32, i32, i32
  }
  func.func @transform_4(%arg0: i32, %arg1: i32) -> (i32, i32, i32) {
    %c0_i32 = arith.constant 0 : i32
    %c0_i32_0 = arith.constant 0 : i32
    %c0_i32_1 = arith.constant 0 : i32
    %c0_i32_2 = arith.constant 0 : i32
    return %c0_i32, %c0_i32_0, %c0_i32_1 : i32, i32, i32
  }
  func.func @transform_5(%arg0: i32, %arg1: i32) -> (i32, i32) {
    %c0_i32 = arith.constant 0 : i32
    %c0_i32_0 = arith.constant 0 : i32
    %c0_i32_1 = arith.constant 0 : i32
    return %c0_i32, %c0_i32_0 : i32, i32
  }
  func.func @transform_6(%arg0: i32, %arg1: i32) -> (i32, i32) {
    %c0_i32 = arith.constant 0 : i32
    %c0_i32_0 = arith.constant 0 : i32
    %c0_i32_1 = arith.constant 0 : i32
    return %c0_i32, %c0_i32_0 : i32, i32
  }
  func.func @transform_7(%arg0: i32, %arg1: i32) -> (i32, i32) {
    %c0_i32 = arith.constant 0 : i32
    %c0_i32_0 = arith.constant 0 : i32
    %c0_i32_1 = arith.constant 0 : i32
    return %c0_i32, %c0_i32_0 : i32, i32
  }
  func.func @transform_8(%arg0: i32, %arg1: i32) -> (i32, i32) {
    %c0_i32 = arith.constant 0 : i32
    %c0_i32_0 = arith.constant 0 : i32
    %c0_i32_1 = arith.constant 0 : i32
    return %c0_i32, %c0_i32_0 : i32, i32
  }
  func.func @transform_9(%arg0: i32, %arg1: i32) -> (i32, i32) {
    %c0_i32 = arith.constant 0 : i32
    %c0_i32_0 = arith.constant 0 : i32
    %c0_i32_1 = arith.constant 0 : i32
    return %c0_i32, %c0_i32_0 : i32, i32
  }
  func.func @transform_10(%arg0: i32, %arg1: i32) -> (i32, i32) {
    %c0_i32 = arith.constant 0 : i32
    %c0_i32_0 = arith.constant 0 : i32
    %c0_i32_1 = arith.constant 0 : i32
    return %c0_i32, %c0_i32_0 : i32, i32
  }
  func.func @transform_11(%arg0: i32, %arg1: i32) -> (i32, i32) {
    %c0_i32 = arith.constant 0 : i32
    %c0_i32_0 = arith.constant 0 : i32
    %c0_i32_1 = arith.constant 0 : i32
    return %c0_i32, %c0_i32_0 : i32, i32
  }
  func.func @transform_12(%arg0: i32, %arg1: i32) -> (i32, i32) {
    %c0_i32 = arith.constant 0 : i32
    %c0_i32_0 = arith.constant 0 : i32
    %c0_i32_1 = arith.constant 0 : i32
    return %c0_i32, %c0_i32_0 : i32, i32
  }
  func.func @transform_13(%arg0: i32, %arg1: i32) -> (i32, i32) {
    %c0_i32 = arith.constant 0 : i32
    %c0_i32_0 = arith.constant 0 : i32
    %c0_i32_1 = arith.constant 0 : i32
    return %c0_i32, %c0_i32_0 : i32, i32
  }
  func.func @transform_14(%arg0: i32, %arg1: i32) -> (i32, i32) {
    %c0_i32 = arith.constant 0 : i32
    %c0_i32_0 = arith.constant 0 : i32
    %c0_i32_1 = arith.constant 0 : i32
    return %c0_i32, %c0_i32_0 : i32, i32
  }
  func.func @transform_15(%arg0: i32, %arg1: i32) -> (i32, i32, i32) {
    %c0_i32 = arith.constant 0 : i32
    %c0_i32_0 = arith.constant 0 : i32
    return %arg0, %arg1, %c0_i32 : i32, i32, i32
  }
}

</mosaic_0001>

<llo_original>
// kernel: tpu_custom_call.1
$region0: #{tpu_custom_call.1}
  #allocation0 [shape = 'u32[]', space=smem, size = 0x4, offset = 0x4, fixed_abs, tag = 'smem constant byte address 0x4 - core index']
  #allocation1 [shape = 'u32[144,128]{1,0:T(1,128)}', space=vmem, size = 0x12000, scoped, tag = 'internal scratch']
  %s0 = inlined_call_operand.hbm [shape: f32[2,8,128], index: 0, kind: input, shape index: {}]
  %s1 = inlined_call_operand.hbm [shape: bf16[2,4,8,32], index: 1, kind: input, shape index: {}]
  %s2 = inlined_call_operand.hbm [shape: bf16[2,4,8,32], index: 2, kind: input, shape index: {}]
  %s3 = inlined_call_operand.vmem [shape: bf16[4,128,32], index: 3, kind: input, shape index: {}]
  %s4 = inlined_call_operand.vmem [shape: f32[4,1,32], index: 4, kind: input, shape index: {}]
  %s5 = inlined_call_operand.vmem [shape: bf16[128,128], index: 5, kind: input, shape index: {}]
  %s6 = inlined_call_operand.vmem [shape: f32[1,128], index: 6, kind: input, shape index: {}]
  %s7 = inlined_call_operand.vmem [shape: f32[1,128], index: 7, kind: input, shape index: {}]
  %s8 = inlined_call_operand.vmem [shape: f32[1,128], index: 8, kind: input, shape index: {}]
  %s9 = inlined_call_operand.vmem [shape: bf16[128,256], index: 9, kind: input, shape index: {}]
  %s10 = inlined_call_operand.vmem [shape: f32[1,256], index: 10, kind: input, shape index: {}]
  %s11 = inlined_call_operand.vmem [shape: bf16[256,128], index: 11, kind: input, shape index: {}]
  %s12 = inlined_call_operand.vmem [shape: f32[1,128], index: 12, kind: input, shape index: {}]
  %s13 = inlined_call_operand.vmem [shape: f32[1,128], index: 13, kind: input, shape index: {}]
  %s14 = inlined_call_operand.vmem [shape: f32[1,128], index: 14, kind: input, shape index: {}]
  %s15 = inlined_call_operand.hbm [shape: f32[2,8,128], index: 15, kind: output, shape index: {}]
  %s16 = sld [smem:[#allocation0]]
  $region105: #{tpu_custom_call.1} parent=0
    _
  %s18 = ssub.s32 1, %s16
  %s19 = scalar_select 0, %s18, %s16
  $region1: #{tpu_custom_call.1} parent=0
    #allocation2 [shape = 'u8[8192]{0}', space=vmem, size = 0x2000, scoped, tag = 'input window, operand 0']
    #allocation3 [shape = 's32[2]{0}', space=sflag, size = 0x8, scoped, tag = 'scoped memory for tpu_custom_call.1']
    #allocation4 [shape = 's32[2]{0}', space=sflag, size = 0x8, scoped, tag = 'scoped memory for tpu_custom_call.1']
    #allocation5 [shape = 'u8[16384]{0}', space=vmem, size = 0x4000, scoped, tag = 'input window, operand 1']
    #allocation6 [shape = 's32[2]{0}', space=sflag, size = 0x8, scoped, tag = 'scoped memory for tpu_custom_call.1']
    #allocation7 [shape = 'u8[16384]{0}', space=vmem, size = 0x4000, scoped, tag = 'input window, operand 2']
    #allocation8 [shape = 'u8[8192]{0}', space=vmem, size = 0x2000, scoped, tag = 'output window, operand 0']
    %20 = vsyncpa [#allocation3], 0
    %s21 = scalar_lea.sflag [#allocation3], 1
    %22 = vsyncpa %s21, 0
    %23 = vsyncpa [#allocation6], 0
    %s24 = scalar_lea.sflag [#allocation6], 1
    %25 = vsyncpa %s24, 0
    %26 = vsyncpa [#allocation4], 0
    %s27 = scalar_lea.sflag [#allocation4], 1
    %28 = vsyncpa %s27, 0
    loop: start=0, step=1, limit=4
    $region2: #{tpu_custom_call.1} parent=1 // loop_pre_header
      _
    $region3: #{tpu_custom_call.1} parent=1 // loop_header
      %s30 = sphi 0, %s34
      %p31 = scmp.ge.s32.totalorder %s30, 4
      %s37 = sphi 0, %s49
      %s38 = sphi 0, %s45
      %s39 = sphi 0, %s37
      %s40 = sphi 0, %s38
      %s41 = sphi 0, %s39
      %s42 = sphi 0, %s40
      %s54 = sphi 0, %s56
      %s57 = sphi 0, %s54
      %s58 = sphi 0, %s57
      %s74 = sphi 0, %s58
      %s80 = sphi 0, %s82
      %s83 = sphi 0, %s80
      %s84 = sphi 0, %s83
      %s100 = sphi 0, %s84
      %s106 = sphi 0, %s108
      %s109 = sphi 0, %s106
      %s110 = sphi 0, %s109
      %s126 = sphi 0, %s110
      %s130 = sphi 0, %s130
      %s132 = sphi 0, %s130
      %s133 = sphi 0, %s132
      %s147 = sphi 0, %s133
      %s151 = sphi 0, %s151
      %s153 = sphi 0, %s151
      %s154 = sphi 0, %s153
      %s168 = sphi 0, %s154
      %s172 = sphi 0, %s172
      %s174 = sphi 0, %s172
      %s175 = sphi 0, %s174
      %s189 = sphi 0, %s175
      %s193 = sphi 0, %s193
      %s195 = sphi 0, %s193
      %s196 = sphi 0, %s195
      %s210 = sphi 0, %s196
      %s214 = sphi 0, %s214
      %s216 = sphi 0, %s214
      %s217 = sphi 0, %s216
      %s231 = sphi 0, %s217
      %s235 = sphi 0, %s235
      %s237 = sphi 0, %s235
      %s238 = sphi 0, %s237
      %s252 = sphi 0, %s238
      %s256 = sphi 0, %s256
      %s258 = sphi 0, %s256
      %s259 = sphi 0, %s258
      %s273 = sphi 0, %s259
      %s277 = sphi 0, %s277
      %s279 = sphi 0, %s277
      %s280 = sphi 0, %s279
      %s294 = sphi 0, %s280
      %s298 = sphi 0, %s298
      %s300 = sphi 0, %s298
      %s301 = sphi 0, %s300
      %s315 = sphi 0, %s301
      %s319 = sphi 0, %s319
      %s321 = sphi 0, %s319
      %s322 = sphi 0, %s321
      %s336 = sphi 0, %s322
      %s340 = sphi 0, %s340
      %s342 = sphi 0, %s340
      %s343 = sphi 0, %s342
      %s357 = sphi 0, %s343
      %s361 = sphi 0, %s361
      %s363 = sphi 0, %s361
      %s364 = sphi 0, %s363
      %s378 = sphi 0, %s364
      %s386 = sphi 0, %s388
      %s389 = sphi 0, %s386
      %s390 = sphi 0, %s389
      %s406 = sphi 0, %s390
    $region4: #{tpu_custom_call.1} parent=1 // loop_header_branch
      %33 = sbr.rel (%p31) target = $region8
    $region5: #{tpu_custom_call.1} parent=1 // loop_body
      %s35 = ssub.s32 %s30, 1
      %s36 = ssub.s32 %s30, 2
      %s43 = sadd.s32 1, %s38
      %p44 = scmp.ge.s32.totalorder %s43, 1
      %s45 = scalar_select %p44, 0, %s43
      %s46 = sadd.s32 1, %s37
      %s47 = scalar_select %p44, %s46, %s37
      %p48 = scmp.ge.s32.totalorder %s47, 2
      %s49 = scalar_select %p48, 0, %s47
      %s50 = ssub.s32 %s37, %s49
      %s51 = ssub.s32 %s38, %s45
      %s52 = sor.u32 %s50, %s51
      %p53 = scmp.eq.s32.totalorder %s52, 0
      %s55 = sadd.s32 %s54, 1
      %s56 = scalar_select %p53, %s54, %s55
      %p59 = pneg %p53
      %p60 = scmp.eq.s32.totalorder %s30, 1
      %p61 = por %p59, %p60
      %p62 = scmp.ne.s32.totalorder %s54, %s57
      %p63 = scmp.eq.s32.totalorder %s30, 0
      %p64 = por %p62, %p63
      %p65 = scmp.ne.s32.totalorder %s54, %s57
      %p66 = scmp.eq.s32.totalorder %s35, 1
      %p67 = por %p65, %p66
      %p68 = scmp.ne.s32.totalorder %s57, %s58
      %p69 = scmp.eq.s32.totalorder %s35, 0
      %p70 = por %p68, %p69
      %p71 = scmp.ne.s32.totalorder %s57, %s58
      %p72 = scmp.eq.s32.totalorder %s36, 1
      %p73 = por %p71, %p72
      %p75 = scmp.ne.s32.totalorder %s58, %s74
      %p76 = scmp.eq.s32.totalorder %s36, 0
      %p77 = por %p75, %p76
      %s78 = ssub.s32 %s37, %s49
      %p79 = scmp.eq.s32.totalorder %s78, 0
      %s81 = sadd.s32 %s80, 1
      %s82 = scalar_select %p79, %s80, %s81
      %p85 = pneg %p79
      %p86 = scmp.eq.s32.totalorder %s30, 1
      %p87 = por %p85, %p86
      %p88 = scmp.ne.s32.totalorder %s80, %s83
      %p89 = scmp.eq.s32.totalorder %s30, 0
      %p90 = por %p88, %p89
      %p91 = scmp.ne.s32.totalorder %s80, %s83
      %p92 = scmp.eq.s32.totalorder %s35, 1
      %p93 = por %p91, %p92
      %p94 = scmp.ne.s32.totalorder %s83, %s84
      %p95 = scmp.eq.s32.totalorder %s35, 0
      %p96 = por %p94, %p95
      %p97 = scmp.ne.s32.totalorder %s83, %s84
      %p98 = scmp.eq.s32.totalorder %s36, 1
      %p99 = por %p97, %p98
      %p101 = scmp.ne.s32.totalorder %s84, %s100
      %p102 = scmp.eq.s32.totalorder %s36, 0
      %p103 = por %p101, %p102
      %s104 = ssub.s32 %s37, %s49
      %p105 = scmp.eq.s32.totalorder %s104, 0
      %s107 = sadd.s32 %s106, 1
      %s108 = scalar_select %p105, %s106, %s107
      %p111 = pneg %p105
      %p112 = scmp.eq.s32.totalorder %s30, 1
      %p113 = por %p111, %p112
      %p114 = scmp.ne.s32.totalorder %s106, %s109
      %p115 = scmp.eq.s32.totalorder %s30, 0
      %p116 = por %p114, %p115
      %p117 = scmp.ne.s32.totalorder %s106, %s109
      %p118 = scmp.eq.s32.totalorder %s35, 1
      %p119 = por %p117, %p118
      %p120 = scmp.ne.s32.totalorder %s109, %s110
      %p121 = scmp.eq.s32.totalorder %s35, 0
      %p122 = por %p120, %p121
      %p123 = scmp.ne.s32.totalorder %s109, %s110
      %p124 = scmp.eq.s32.totalorder %s36, 1
      %p125 = por %p123, %p124
      %p127 = scmp.ne.s32.totalorder %s110, %s126
      %p128 = scmp.eq.s32.totalorder %s36, 0
      %p129 = por %p127, %p128
      %s131 = sadd.s32 %s130, 1
      %p134 = scmp.eq.s32.totalorder %s30, 1
      %p135 = scmp.ne.s32.totalorder %s130, %s132
      %p136 = scmp.eq.s32.totalorder %s30, 0
      %p137 = por %p135, %p136
      %p138 = scmp.ne.s32.totalorder %s130, %s132
      %p139 = scmp.eq.s32.totalorder %s35, 1
      %p140 = por %p138, %p139
      %p141 = scmp.ne.s32.totalorder %s132, %s133
      %p142 = scmp.eq.s32.totalorder %s35, 0
      %p143 = por %p141, %p142
      %p144 = scmp.ne.s32.totalorder %s132, %s133
      %p145 = scmp.eq.s32.totalorder %s36, 1
      %p146 = por %p144, %p145
      %p148 = scmp.ne.s32.totalorder %s133, %s147
      %p149 = scmp.eq.s32.totalorder %s36, 0
      %p150 = por %p148, %p149
      %s152 = sadd.s32 %s151, 1
      %p155 = scmp.eq.s32.totalorder %s30, 1
      %p156 = scmp.ne.s32.totalorder %s151, %s153
      %p157 = scmp.eq.s32.totalorder %s30, 0
      %p158 = por %p156, %p157
      %p159 = scmp.ne.s32.totalorder %s151, %s153
      %p160 = scmp.eq.s32.totalorder %s35, 1
      %p161 = por %p159, %p160
      %p162 = scmp.ne.s32.totalorder %s153, %s154
      %p163 = scmp.eq.s32.totalorder %s35, 0
      %p164 = por %p162, %p163
      %p165 = scmp.ne.s32.totalorder %s153, %s154
      %p166 = scmp.eq.s32.totalorder %s36, 1
      %p167 = por %p165, %p166
      %p169 = scmp.ne.s32.totalorder %s154, %s168
      %p170 = scmp.eq.s32.totalorder %s36, 0
      %p171 = por %p169, %p170
      %s173 = sadd.s32 %s172, 1
      %p176 = scmp.eq.s32.totalorder %s30, 1
      %p177 = scmp.ne.s32.totalorder %s172, %s174
      %p178 = scmp.eq.s32.totalorder %s30, 0
      %p179 = por %p177, %p178
      %p180 = scmp.ne.s32.totalorder %s172, %s174
      %p181 = scmp.eq.s32.totalorder %s35, 1
      %p182 = por %p180, %p181
      %p183 = scmp.ne.s32.totalorder %s174, %s175
      %p184 = scmp.eq.s32.totalorder %s35, 0
      %p185 = por %p183, %p184
      %p186 = scmp.ne.s32.totalorder %s174, %s175
      %p187 = scmp.eq.s32.totalorder %s36, 1
      %p188 = por %p186, %p187
      %p190 = scmp.ne.s32.totalorder %s175, %s189
      %p191 = scmp.eq.s32.totalorder %s36, 0
      %p192 = por %p190, %p191
      %s194 = sadd.s32 %s193, 1
      %p197 = scmp.eq.s32.totalorder %s30, 1
      %p198 = scmp.ne.s32.totalorder %s193, %s195
      %p199 = scmp.eq.s32.totalorder %s30, 0
      %p200 = por %p198, %p199
      %p201 = scmp.ne.s32.totalorder %s193, %s195
      %p202 = scmp.eq.s32.totalorder %s35, 1
      %p203 = por %p201, %p202
      %p204 = scmp.ne.s32.totalorder %s195, %s196
      %p205 = scmp.eq.s32.totalorder %s35, 0
      %p206 = por %p204, %p205
      %p207 = scmp.ne.s32.totalorder %s195, %s196
      %p208 = scmp.eq.s32.totalorder %s36, 1
      %p209 = por %p207, %p208
      %p211 = scmp.ne.s32.totalorder %s196, %s210
      %p212 = scmp.eq.s32.totalorder %s36, 0
      %p213 = por %p211, %p212
      %s215 = sadd.s32 %s214, 1
      %p218 = scmp.eq.s32.totalorder %s30, 1
      %p219 = scmp.ne.s32.totalorder %s214, %s216
      %p220 = scmp.eq.s32.totalorder %s30, 0
      %p221 = por %p219, %p220
      %p222 = scmp.ne.s32.totalorder %s214, %s216
      %p223 = scmp.eq.s32.totalorder %s35, 1
      %p224 = por %p222, %p223
      %p225 = scmp.ne.s32.totalorder %s216, %s217
      %p226 = scmp.eq.s32.totalorder %s35, 0
      %p227 = por %p225, %p226
      %p228 = scmp.ne.s32.totalorder %s216, %s217
      %p229 = scmp.eq.s32.totalorder %s36, 1
      %p230 = por %p228, %p229
      %p232 = scmp.ne.s32.totalorder %s217, %s231
      %p233 = scmp.eq.s32.totalorder %s36, 0
      %p234 = por %p232, %p233
      %s236 = sadd.s32 %s235, 1
      %p239 = scmp.eq.s32.totalorder %s30, 1
      %p240 = scmp.ne.s32.totalorder %s235, %s237
      %p241 = scmp.eq.s32.totalorder %s30, 0
      %p242 = por %p240, %p241
      %p243 = scmp.ne.s32.totalorder %s235, %s237
      %p244 = scmp.eq.s32.totalorder %s35, 1
      %p245 = por %p243, %p244
      %p246 = scmp.ne.s32.totalorder %s237, %s238
      %p247 = scmp.eq.s32.totalorder %s35, 0
      %p248 = por %p246, %p247
      %p249 = scmp.ne.s32.totalorder %s237, %s238
      %p250 = scmp.eq.s32.totalorder %s36, 1
      %p251 = por %p249, %p250
      %p253 = scmp.ne.s32.totalorder %s238, %s252
      %p254 = scmp.eq.s32.totalorder %s36, 0
      %p255 = por %p253, %p254
      %s257 = sadd.s32 %s256, 1
      %p260 = scmp.eq.s32.totalorder %s30, 1
      %p261 = scmp.ne.s32.totalorder %s256, %s258
      %p262 = scmp.eq.s32.totalorder %s30, 0
      %p263 = por %p261, %p262
      %p264 = scmp.ne.s32.totalorder %s256, %s258
      %p265 = scmp.eq.s32.totalorder %s35, 1
      %p266 = por %p264, %p265
      %p267 = scmp.ne.s32.totalorder %s258, %s259
      %p268 = scmp.eq.s32.totalorder %s35, 0
      %p269 = por %p267, %p268
      %p270 = scmp.ne.s32.totalorder %s258, %s259
      %p271 = scmp.eq.s32.totalorder %s36, 1
      %p272 = por %p270, %p271
      %p274 = scmp.ne.s32.totalorder %s259, %s273
      %p275 = scmp.eq.s32.totalorder %s36, 0
      %p276 = por %p274, %p275
      %s278 = sadd.s32 %s277, 1
      %p281 = scmp.eq.s32.totalorder %s30, 1
      %p282 = scmp.ne.s32.totalorder %s277, %s279
      %p283 = scmp.eq.s32.totalorder %s30, 0
      %p284 = por %p282, %p283
      %p285 = scmp.ne.s32.totalorder %s277, %s279
      %p286 = scmp.eq.s32.totalorder %s35, 1
      %p287 = por %p285, %p286
      %p288 = scmp.ne.s32.totalorder %s279, %s280
      %p289 = scmp.eq.s32.totalorder %s35, 0
      %p290 = por %p288, %p289
      %p291 = scmp.ne.s32.totalorder %s279, %s280
      %p292 = scmp.eq.s32.totalorder %s36, 1
      %p293 = por %p291, %p292
      %p295 = scmp.ne.s32.totalorder %s280, %s294
      %p296 = scmp.eq.s32.totalorder %s36, 0
      %p297 = por %p295, %p296
      %s299 = sadd.s32 %s298, 1
      %p302 = scmp.eq.s32.totalorder %s30, 1
      %p303 = scmp.ne.s32.totalorder %s298, %s300
      %p304 = scmp.eq.s32.totalorder %s30, 0
      %p305 = por %p303, %p304
      %p306 = scmp.ne.s32.totalorder %s298, %s300
      %p307 = scmp.eq.s32.totalorder %s35, 1
      %p308 = por %p306, %p307
      %p309 = scmp.ne.s32.totalorder %s300, %s301
      %p310 = scmp.eq.s32.totalorder %s35, 0
      %p311 = por %p309, %p310
      %p312 = scmp.ne.s32.totalorder %s300, %s301
      %p313 = scmp.eq.s32.totalorder %s36, 1
      %p314 = por %p312, %p313
      %p316 = scmp.ne.s32.totalorder %s301, %s315
      %p317 = scmp.eq.s32.totalorder %s36, 0
      %p318 = por %p316, %p317
      %s320 = sadd.s32 %s319, 1
      %p323 = scmp.eq.s32.totalorder %s30, 1
      %p324 = scmp.ne.s32.totalorder %s319, %s321
      %p325 = scmp.eq.s32.totalorder %s30, 0
      %p326 = por %p324, %p325
      %p327 = scmp.ne.s32.totalorder %s319, %s321
      %p328 = scmp.eq.s32.totalorder %s35, 1
      %p329 = por %p327, %p328
      %p330 = scmp.ne.s32.totalorder %s321, %s322
      %p331 = scmp.eq.s32.totalorder %s35, 0
      %p332 = por %p330, %p331
      %p333 = scmp.ne.s32.totalorder %s321, %s322
      %p334 = scmp.eq.s32.totalorder %s36, 1
      %p335 = por %p333, %p334
      %p337 = scmp.ne.s32.totalorder %s322, %s336
      %p338 = scmp.eq.s32.totalorder %s36, 0
      %p339 = por %p337, %p338
      %s341 = sadd.s32 %s340, 1
      %p344 = scmp.eq.s32.totalorder %s30, 1
      %p345 = scmp.ne.s32.totalorder %s340, %s342
      %p346 = scmp.eq.s32.totalorder %s30, 0
      %p347 = por %p345, %p346
      %p348 = scmp.ne.s32.totalorder %s340, %s342
      %p349 = scmp.eq.s32.totalorder %s35, 1
      %p350 = por %p348, %p349
      %p351 = scmp.ne.s32.totalorder %s342, %s343
      %p352 = scmp.eq.s32.totalorder %s35, 0
      %p353 = por %p351, %p352
      %p354 = scmp.ne.s32.totalorder %s342, %s343
      %p355 = scmp.eq.s32.totalorder %s36, 1
      %p356 = por %p354, %p355
      %p358 = scmp.ne.s32.totalorder %s343, %s357
      %p359 = scmp.eq.s32.totalorder %s36, 0
      %p360 = por %p358, %p359
      %s362 = sadd.s32 %s361, 1
      %p365 = scmp.eq.s32.totalorder %s30, 1
      %p366 = scmp.ne.s32.totalorder %s361, %s363
      %p367 = scmp.eq.s32.totalorder %s30, 0
      %p368 = por %p366, %p367
      %p369 = scmp.ne.s32.totalorder %s361, %s363
      %p370 = scmp.eq.s32.totalorder %s35, 1
      %p371 = por %p369, %p370
      %p372 = scmp.ne.s32.totalorder %s363, %s364
      %p373 = scmp.eq.s32.totalorder %s35, 0
      %p374 = por %p372, %p373
      %p375 = scmp.ne.s32.totalorder %s363, %s364
      %p376 = scmp.eq.s32.totalorder %s36, 1
      %p377 = por %p375, %p376
      %p379 = scmp.ne.s32.totalorder %s364, %s378
      %p380 = scmp.eq.s32.totalorder %s36, 0
      %p381 = por %p379, %p380
      %s382 = ssub.s32 %s37, %s49
      %s383 = ssub.s32 %s38, %s45
      %s384 = sor.u32 %s382, %s383
      %p385 = scmp.eq.s32.totalorder %s384, 0
      %s387 = sadd.s32 %s386, 1
      %s388 = scalar_select %p385, %s386, %s387
      %p391 = pneg %p385
      %p392 = scmp.eq.s32.totalorder %s30, 1
      %p393 = por %p391, %p392
      %p394 = scmp.ne.s32.totalorder %s386, %s389
      %p395 = scmp.eq.s32.totalorder %s30, 0
      %p396 = por %p394, %p395
      %p397 = scmp.ne.s32.totalorder %s386, %s389
      %p398 = scmp.eq.s32.totalorder %s35, 1
      %p399 = por %p397, %p398
      %p400 = scmp.ne.s32.totalorder %s389, %s390
      %p401 = scmp.eq.s32.totalorder %s35, 0
      %p402 = por %p400, %p401
      %p403 = scmp.ne.s32.totalorder %s389, %s390
      %p404 = scmp.eq.s32.totalorder %s36, 1
      %p405 = por %p403, %p404
      %p407 = scmp.ne.s32.totalorder %s390, %s406
      %p408 = scmp.eq.s32.totalorder %s36, 0
      %p409 = por %p407, %p408
      %p410 = scmp.le.s32.totalorder 1, %s30
      %p411 = scmp.lt.s32.totalorder %s30, 3
      %p412 = pnand %p410, %p411
      %p413 = pneg %p412
      // Predicated region
      $region9: #{tpu_custom_call.1} parent=5 // pred_check
        _
      $region10: #{tpu_custom_call.1} parent=5 // pred_check_branch
        %415 = sbr.rel (%p412) target = $region12
      $region11: #{tpu_custom_call.1} parent=5 // pred_region
        %s416 = ssub.s32 %s30, 1
        // Predicated region
        $region13: #{tpu_custom_call.1} parent=11 // pred_check
          %p417 = pneg %p143
        $region14: #{tpu_custom_call.1} parent=11 // pred_check_branch
          %419 = sbr.rel (%p417) target = $region16
        $region15: #{tpu_custom_call.1} parent=11 // pred_region
          _
        $region16: #{tpu_custom_call.1} parent=11 // pred_fallthru
          _
        // Predicated region
        $region17: #{tpu_custom_call.1} parent=11 // pred_check
          %p420 = pneg %p164
        $region18: #{tpu_custom_call.1} parent=11 // pred_check_branch
          %422 = sbr.rel (%p420) target = $region20
        $region19: #{tpu_custom_call.1} parent=11 // pred_region
          _
        $region20: #{tpu_custom_call.1} parent=11 // pred_fallthru
          _
        // Predicated region
        $region21: #{tpu_custom_call.1} parent=11 // pred_check
          %p423 = pneg %p185
        $region22: #{tpu_custom_call.1} parent=11 // pred_check_branch
          %425 = sbr.rel (%p423) target = $region24
        $region23: #{tpu_custom_call.1} parent=11 // pred_region
          _
        $region24: #{tpu_custom_call.1} parent=11 // pred_fallthru
          _
        // Predicated region
        $region25: #{tpu_custom_call.1} parent=11 // pred_check
          %p426 = pneg %p206
        $region26: #{tpu_custom_call.1} parent=11 // pred_check_branch
          %428 = sbr.rel (%p426) target = $region28
        $region27: #{tpu_custom_call.1} parent=11 // pred_region
          _
        $region28: #{tpu_custom_call.1} parent=11 // pred_fallthru
          _
        // Predicated region
        $region29: #{tpu_custom_call.1} parent=11 // pred_check
          %p429 = pneg %p227
        $region30: #{tpu_custom_call.1} parent=11 // pred_check_branch
          %431 = sbr.rel (%p429) target = $region32
        $region31: #{tpu_custom_call.1} parent=11 // pred_region
          _
        $region32: #{tpu_custom_call.1} parent=11 // pred_fallthru
          _
        // Predicated region
        $region33: #{tpu_custom_call.1} parent=11 // pred_check
          %p432 = pneg %p248
        $region34: #{tpu_custom_call.1} parent=11 // pred_check_branch
          %434 = sbr.rel (%p432) target = $region36
        $region35: #{tpu_custom_call.1} parent=11 // pred_region
          _
        $region36: #{tpu_custom_call.1} parent=11 // pred_fallthru
          _
        // Predicated region
        $region37: #{tpu_custom_call.1} parent=11 // pred_check
          %p435 = pneg %p269
        $region38: #{tpu_custom_call.1} parent=11 // pred_check_branch
          %437 = sbr.rel (%p435) target = $region40
        $region39: #{tpu_custom_call.1} parent=11 // pred_region
          _
        $region40: #{tpu_custom_call.1} parent=11 // pred_fallthru
          _
        // Predicated region
        $region41: #{tpu_custom_call.1} parent=11 // pred_check
          %p438 = pneg %p290
        $region42: #{tpu_custom_call.1} parent=11 // pred_check_branch
          %440 = sbr.rel (%p438) target = $region44
        $region43: #{tpu_custom_call.1} parent=11 // pred_region
          _
        $region44: #{tpu_custom_call.1} parent=11 // pred_fallthru
          _
        // Predicated region
        $region45: #{tpu_custom_call.1} parent=11 // pred_check
          %p441 = pneg %p311
        $region46: #{tpu_custom_call.1} parent=11 // pred_check_branch
          %443 = sbr.rel (%p441) target = $region48
        $region47: #{tpu_custom_call.1} parent=11 // pred_region
          _
        $region48: #{tpu_custom_call.1} parent=11 // pred_fallthru
          _
        // Predicated region
        $region49: #{tpu_custom_call.1} parent=11 // pred_check
          %p444 = pneg %p332
        $region50: #{tpu_custom_call.1} parent=11 // pred_check_branch
          %446 = sbr.rel (%p444) target = $region52
        $region51: #{tpu_custom_call.1} parent=11 // pred_region
          _
        $region52: #{tpu_custom_call.1} parent=11 // pred_fallthru
          _
        // Predicated region
        $region53: #{tpu_custom_call.1} parent=11 // pred_check
          %p447 = pneg %p353
        $region54: #{tpu_custom_call.1} parent=11 // pred_check_branch
          %449 = sbr.rel (%p447) target = $region56
        $region55: #{tpu_custom_call.1} parent=11 // pred_region
          _
        $region56: #{tpu_custom_call.1} parent=11 // pred_fallthru
          _
        // Predicated region
        $region57: #{tpu_custom_call.1} parent=11 // pred_check
          %p450 = pneg %p374
        $region58: #{tpu_custom_call.1} parent=11 // pred_check_branch
          %452 = sbr.rel (%p450) target = $region60
        $region59: #{tpu_custom_call.1} parent=11 // pred_region
          _
        $region60: #{tpu_custom_call.1} parent=11 // pred_fallthru
          _
      $region12: #{tpu_custom_call.1} parent=5 // pred_fallthru
        _
      %p453 = scmp.lt.s32.totalorder %s30, 2
      // Predicated region
      $region61: #{tpu_custom_call.1} parent=5 // pred_check
        %p454 = pneg %p453
      $region62: #{tpu_custom_call.1} parent=5 // pred_check_branch
        %456 = sbr.rel (%p454) target = $region64
      $region63: #{tpu_custom_call.1} parent=5 // pred_region
        // Predicated region
        $region65: #{tpu_custom_call.1} parent=63 // pred_check
          %p457 = pneg %p64
        $region66: #{tpu_custom_call.1} parent=63 // pred_check_branch
          %459 = sbr.rel (%p457) target = $region68
        $region67: #{tpu_custom_call.1} parent=63 // pred_region
          %s460 = sand.u32 %s54, 1
          %s461 = scalar_lea.sflag [#allocation3], %s460
          %s462 = sand.u32 %s54, 1
          %s463 = smul.addr %s462, 8
          %s464 = scalar_lea.vmem [#allocation2], %s463
          %s466 = ssub.s32 128, 128
          %467 = vsyncadd %s461, %s466
          %s468 = sadd.s32 %s38, %s37
          %s469 = smul.addr %s468, 128
          %s470 = scalar_lea.hbm %s0, %s469
          %s472 = sshll.u32 %s464, 4
          %s473 = int_to_ptr.vmem [resolvable:$true] %s472
          %475 = dma.hbm_to_vmem [thread:$0]  %s470, 128, %s473, %s461
        $region68: #{tpu_custom_call.1} parent=63 // pred_fallthru
          _
        // Predicated region
        $region69: #{tpu_custom_call.1} parent=63 // pred_check
          %p476 = pneg %p90
        $region70: #{tpu_custom_call.1} parent=63 // pred_check_branch
          %478 = sbr.rel (%p476) target = $region72
        $region71: #{tpu_custom_call.1} parent=63 // pred_region
          %s479 = sand.u32 %s30, 1
          %s480 = scalar_lea.sflag [#allocation6], %s479
          %s481 = sand.u32 %s80, 1
          %s482 = smul.addr %s481, 16
          %s483 = scalar_lea.vmem [#allocation5], %s482
          %s485 = ssub.s32 256, 256
          %486 = vsyncadd %s480, %s485
          %s487 = smul.addr %s37, 4
          %s488 = smul.addr %s487, 64
          %s489 = scalar_lea.hbm %s1, %s488
          %s490 = sshll.u32 %s483, 4
          %s491 = int_to_ptr.vmem [resolvable:$true] %s490
          %496 = dma.hbm_to_vmem [thread:$0]  %s489, 256, %s491, %s480, 64, 64, 4
        $region72: #{tpu_custom_call.1} parent=63 // pred_fallthru
          _
        // Predicated region
        $region73: #{tpu_custom_call.1} parent=63 // pred_check
          %p497 = pneg %p116
        $region74: #{tpu_custom_call.1} parent=63 // pred_check_branch
          %499 = sbr.rel (%p497) target = $region76
        $region75: #{tpu_custom_call.1} parent=63 // pred_region
          %s500 = sand.u32 %s30, 1
          %s501 = scalar_lea.sflag [#allocation6], %s500
          %s502 = sand.u32 %s106, 1
          %s503 = smul.addr %s502, 16
          %s504 = scalar_lea.vmem [#allocation7], %s503
          %s506 = ssub.s32 256, 256
          %507 = vsyncadd %s501, %s506
          %s508 = smul.addr %s37, 4
          %s509 = smul.addr %s508, 64
          %s510 = scalar_lea.hbm %s2, %s509
          %s511 = sshll.u32 %s504, 4
          %s512 = int_to_ptr.vmem [resolvable:$true] %s511
          %517 = dma.hbm_to_vmem [thread:$0]  %s510, 256, %s512, %s501, 64, 64, 4
        $region76: #{tpu_custom_call.1} parent=63 // pred_fallthru
          _
      $region64: #{tpu_custom_call.1} parent=5 // pred_fallthru
        _
      %p518 = scmp.le.s32.totalorder 1, %s30
      %p519 = scmp.lt.s32.totalorder %s30, 3
      %p520 = pnand %p518, %p519
      %p521 = pneg %p520
      // Predicated region
      $region77: #{tpu_custom_call.1} parent=5 // pred_check
        _
      $region78: #{tpu_custom_call.1} parent=5 // pred_check_branch
        %523 = sbr.rel (%p520) target = $region80
      $region79: #{tpu_custom_call.1} parent=5 // pred_region
        %s524 = ssub.s32 %s30, 1
        %s525 = sand.u32 %s57, 1
        %s526 = scalar_lea.sflag [#allocation3], %s525
        %s527 = sand.u32 %s57, 1
        %s528 = smul.addr %s527, 8
        %s529 = scalar_lea.vmem [#allocation2], %s528
        // Predicated region
        $region81: #{tpu_custom_call.1} parent=79 // pred_check
          %p530 = pneg %p70
        $region82: #{tpu_custom_call.1} parent=79 // pred_check_branch
          %532 = sbr.rel (%p530) target = $region84
        $region83: #{tpu_custom_call.1} parent=79 // pred_region
          %533 = dma.done %s526, 128
        $region84: #{tpu_custom_call.1} parent=79 // pred_fallthru
          _
        %s534 = sand.u32 %s35, 1
        %s535 = scalar_lea.sflag [#allocation6], %s534
        %s536 = sand.u32 %s83, 1
        %s537 = smul.addr %s536, 16
        %s538 = scalar_lea.vmem [#allocation5], %s537
        // Predicated region
        $region85: #{tpu_custom_call.1} parent=79 // pred_check
          %p539 = pneg %p96
        $region86: #{tpu_custom_call.1} parent=79 // pred_check_branch
          %541 = sbr.rel (%p539) target = $region88
        $region87: #{tpu_custom_call.1} parent=79 // pred_region
          %542 = dma.done %s535, 256
        $region88: #{tpu_custom_call.1} parent=79 // pred_fallthru
          _
        %s543 = sand.u32 %s35, 1
        %s544 = scalar_lea.sflag [#allocation6], %s543
        %s545 = sand.u32 %s109, 1
        %s546 = smul.addr %s545, 16
        %s547 = scalar_lea.vmem [#allocation7], %s546
        // Predicated region
        $region89: #{tpu_custom_call.1} parent=79 // pred_check
          %p548 = pneg %p122
        $region90: #{tpu_custom_call.1} parent=79 // pred_check_branch
          %550 = sbr.rel (%p548) target = $region92
        $region91: #{tpu_custom_call.1} parent=79 // pred_region
          %551 = dma.done %s544, 256
        $region92: #{tpu_custom_call.1} parent=79 // pred_fallthru
          _
        %s552 = sand.u32 %s57, 1
        %s553 = scalar_lea.sflag [#allocation3], %s552
        %s554 = sand.u32 %s57, 1
        %s555 = smul.addr %s554, 8
        %s556 = scalar_lea.vmem [#allocation2], %s555
        %p557 = pneg %p70
        %p558 = pneg %p67
        %s559 = sand.u32 %s35, 1
        %s560 = scalar_lea.sflag [#allocation6], %s559
        %s561 = sand.u32 %s83, 1
        %s562 = smul.addr %s561, 16
        %s563 = scalar_lea.vmem [#allocation5], %s562
        %p564 = pneg %p96
        %p565 = pneg %p93
        %s566 = sand.u32 %s35, 1
        %s567 = scalar_lea.sflag [#allocation6], %s566
        %s568 = sand.u32 %s109, 1
        %s569 = smul.addr %s568, 16
        %s570 = scalar_lea.vmem [#allocation7], %s569
        %p571 = pneg %p122
        %p572 = pneg %p119
        %p573 = pneg %p143
        %p574 = pneg %p140
        %p575 = pneg %p164
        %p576 = pneg %p161
        %p577 = pneg %p185
        %p578 = pneg %p182
        %p579 = pneg %p206
        %p580 = pneg %p203
        %p581 = pneg %p227
        %p582 = pneg %p224
        %p583 = pneg %p248
        %p584 = pneg %p245
        %p585 = pneg %p269
        %p586 = pneg %p266
        %p587 = pneg %p290
        %p588 = pneg %p287
        %p589 = pneg %p311
        %p590 = pneg %p308
        %p591 = pneg %p332
        %p592 = pneg %p329
        %p593 = pneg %p353
        %p594 = pneg %p350
        %p595 = pneg %p374
        %p596 = pneg %p371
        %p597 = pneg %p402
        %p598 = pneg %p399
        %s599 = sand.u32 %s389, 1
        %s600 = scalar_lea.sflag [#allocation4], %s599
        %s601 = sand.u32 %s389, 1
        %s602 = smul.addr %s601, 8
        %s603 = scalar_lea.vmem [#allocation8], %s602
        %v605 = vld [vmem:[%s529] sm:$0xff]
        %v606 = vpack.c.bf16 %v605, %v605
        %v607 = vld [vmem:[%s3] sm:$0xf]
        %v608 = vld [vmem:[%s3 + $0x4] sm:$0xf]
        %v609 = vld [vmem:[%s3 + $0x8] sm:$0xf]
        %v610 = vld [vmem:[%s3 + $0xc] sm:$0xf]
        %v611 = vld [vmem:[%s3 + $0x10] sm:$0xf]
        %v612 = vld [vmem:[%s3 + $0x14] sm:$0xf]
        %v613 = vld [vmem:[%s3 + $0x18] sm:$0xf]
        %v614 = vld [vmem:[%s3 + $0x1c] sm:$0xf]
        %v615 = vld [vmem:[%s3 + $0x20] sm:$0xf]
        %v616 = vld [vmem:[%s3 + $0x24] sm:$0xf]
        %v617 = vld [vmem:[%s3 + $0x28] sm:$0xf]
        %v618 = vld [vmem:[%s3 + $0x2c] sm:$0xf]
        %v619 = vld [vmem:[%s3 + $0x30] sm:$0xf]
        %v620 = vld [vmem:[%s3 + $0x34] sm:$0xf]
        %v621 = vld [vmem:[%s3 + $0x38] sm:$0xf]
        %v622 = vld [vmem:[%s3 + $0x3c] sm:$0xf]
        %v623 = vld [vmem:[%s4] sm:$0x1]
        %v625 = vlaneseq
        %v626 = vshrl.u32 %v625, 7
        %v627 = vsub.s32 0, %v626
        %v628 = vrot.slane %v623, %v627
        %v646 = vunpack.c.l.b16 %v607
        %v647 = vunpack.c.l.b16 %v608
        %v648 = vunpack.c.l.b16 %v609
        %v649 = vunpack.c.l.b16 %v610
        %v650 = vunpack.c.l.b16 %v611
        %v651 = vunpack.c.l.b16 %v612
        %v652 = vunpack.c.l.b16 %v613
        %v653 = vunpack.c.l.b16 %v614
        %v654 = vunpack.c.l.b16 %v615
        %v655 = vunpack.c.l.b16 %v616
        %v656 = vunpack.c.l.b16 %v617
        %v657 = vunpack.c.l.b16 %v618
        %v658 = vunpack.c.l.b16 %v619
        %v659 = vunpack.c.l.b16 %v620
        %v660 = vunpack.c.l.b16 %v621
        %v661 = vunpack.c.l.b16 %v622
        %v662 = vpack.c.b16 %v647, %v646
        %v663 = vpack.c.b16 %v649, %v648
        %v664 = vpack.c.b16 %v651, %v650
        %v665 = vpack.c.b16 %v653, %v652
        %v666 = vpack.c.b16 %v655, %v654
        %v667 = vpack.c.b16 %v657, %v656
        %v668 = vpack.c.b16 %v659, %v658
        %v669 = vpack.c.b16 %v661, %v660
        %678 = vmatprep.subr.bf16.mxu0 0
        %679 = vmatpush1.bf16.msra.mxu0 %v662
        %680 = vmatprep.subr.bf16.mxu0 0
        %681 = vmatpush1.bf16.msra.mxu0 %v663
        %682 = vmatprep.subr.bf16.mxu0 0
        %683 = vmatpush1.bf16.msra.mxu0 %v664
        %684 = vmatprep.subr.bf16.mxu0 0
        %685 = vmatpush1.bf16.msra.mxu0 %v665
        %686 = vmatprep.subr.bf16.mxu0 0
        %687 = vmatpush1.bf16.msra.mxu0 %v666
        %688 = vmatprep.subr.bf16.mxu0 0
        %689 = vmatpush1.bf16.msra.mxu0 %v667
        %690 = vmatprep.subr.bf16.mxu0 0
        %691 = vmatpush1.bf16.msra.mxu0 %v668
        %692 = vmatprep.subr.bf16.mxu0 0
        %693 = vmatpush1.bf16.msra.mxu0 %v669
        %694 = vmatprep.subr.bf16.mxu0 0
        %695 = vmatpush1.bf16.msra.mxu0 0
        %696 = vmatprep.subr.bf16.mxu0 0
        %697 = vmatpush1.bf16.msra.mxu0 0
        %698 = vmatprep.subr.bf16.mxu0 0
        %699 = vmatpush1.bf16.msra.mxu0 0
        %700 = vmatprep.subr.bf16.mxu0 0
        %701 = vmatpush1.bf16.msra.mxu0 0
        %702 = vmatprep.subr.bf16.mxu0 0
        %703 = vmatpush1.bf16.msra.mxu0 0
        %704 = vmatprep.subr.bf16.mxu0 0
        %705 = vmatpush1.bf16.msra.mxu0 0
        %706 = vmatprep.subr.bf16.mxu0 0
        %707 = vmatpush1.bf16.msra.mxu0 0
        %708 = vmatprep.subr.bf16.mxu0 0
        %709 = vmatpush1.bf16.msra.mxu0 0
        %710 = vmatprep.mubr.bf16.mxu0 0
        %711 = vmatmul.mubr.bf16.gmra.mrb[0].mxu0 %v606
        %v712 = vpop.f32.mrb[0].mxu0
        %v713 = vadd.f32 %v628, %v712
        %v714 = vpop.f32.mrb[0].mxu0
        %v715 = vpop.f32.mrb[0].mxu0
        %v716 = vpop.f32.mrb[0].mxu0
        %717 = vdwg.mxu0
        %v718 = vmul.f32 %v713, 0.17677669
        %v719 = vld [vmem:[%s538] sm:$0xf]
        %v720 = vld [vmem:[%s547] sm:$0xf]
        %v721 = vpack.c.bf16 %v718, %v718
        %vm722 = vcmask 261120
        %v724 = vsel %vm722, %v721, 0
        %v727 = vsel %vm722, %v719, 0
        %729 = vmatprep.subr.bf16.mxu0 0
        %730 = vmatpush1.bf16.xpose.msra.mxu0 %v727
        %731 = vmatprep.subr.bf16.mxu0 0
        %732 = vmatpush1.bf16.xpose.msra.mxu0 0
        %733 = vmatprep.subr.bf16.mxu0 0
        %734 = vmatpush1.bf16.xpose.msra.mxu0 0
        %735 = vmatprep.subr.bf16.mxu0 0
        %736 = vmatpush1.bf16.xpose.msra.mxu0 0
        %737 = vmatprep.subr.bf16.mxu0 0
        %738 = vmatpush1.bf16.xpose.msra.mxu0 0
        %739 = vmatprep.subr.bf16.mxu0 0
        %740 = vmatpush1.bf16.xpose.msra.mxu0 0
        %741 = vmatprep.subr.bf16.mxu0 0
        %742 = vmatpush1.bf16.xpose.msra.mxu0 0
        %743 = vmatprep.subr.bf16.mxu0 0
        %744 = vmatpush1.bf16.xpose.msra.mxu0 0
        %745 = vmatprep.subr.bf16.mxu0 0
        %746 = vmatpush1.bf16.xpose.msra.mxu0 0
        %747 = vmatprep.subr.bf16.mxu0 0
        %748 = vmatpush1.bf16.xpose.msra.mxu0 0
        %749 = vmatprep.subr.bf16.mxu0 0
        %750 = vmatpush1.bf16.xpose.msra.mxu0 0
        %751 = vmatprep.subr.bf16.mxu0 0
        %752 = vmatpush1.bf16.xpose.msra.mxu0 0
        %753 = vmatprep.subr.bf16.mxu0 0
        %754 = vmatpush1.bf16.xpose.msra.mxu0 0
        %755 = vmatprep.subr.bf16.mxu0 0
        %756 = vmatpush1.bf16.xpose.msra.mxu0 0
        %757 = vmatprep.subr.bf16.mxu0 0
        %758 = vmatpush1.bf16.xpose.msra.mxu0 0
        %759 = vmatprep.subr.bf16.mxu0 0
        %760 = vmatpush1.bf16.xpose.msra.mxu0 0
        %761 = vmatprep.mubr.bf16.mxu0 0
        %762 = vmatmul.mubr.bf16.gmra.mrb[0].mxu0 %v724
        %v763 = vpop.f32.mrb[0].mxu0
        %v764 = vadd.f32 0.0, %v763
        %v765 = vpop.f32.mrb[0].mxu0
        %v766 = vpop.f32.mrb[0].mxu0
        %v767 = vpop.f32.mrb[0].mxu0
        %768 = vdwg.mxu0
        %vm769 = vcmask 64512
        %v770 = vsel %vm769, %v764, -inf
        %771 = vmax.xlane.f32.xlu0 %v770
        %v772 = vpop.xlane.xlu0 %771
        %v773 = vsub.f32 %v764, %v772
        %v774 = vmul.f32 %v773, 1.442695
        %v775 = vpow.pop %v774
        %v776 = vsel %vm769, %v775, 0.0
        %777 = vadd.xlane.f32.xlu0 %v776
        %v778 = vpop.xlane.xlu0 %777
        %v779 = vrcp.pop %v778
        %v780 = vmul.f32 %v775, %v779
        %v781 = vpack.c.bf16 %v780, %v780
        %v783 = vsel %vm769, %v781, 0
        %vm785 = vcmask 1043456
        %v787 = vsel %vm785, %v720, 0
        %789 = vmatprep.subr.bf16.mxu0 0
        %790 = vmatpush1.bf16.msra.mxu0 %v787
        %791 = vmatprep.subr.bf16.mxu0 0
        %792 = vmatpush1.bf16.msra.mxu0 0
        %793 = vmatprep.subr.bf16.mxu0 0
        %794 = vmatpush1.bf16.msra.mxu0 0
        %795 = vmatprep.subr.bf16.mxu0 0
        %796 = vmatpush1.bf16.msra.mxu0 0
        %797 = vmatprep.subr.bf16.mxu0 0
        %798 = vmatpush1.bf16.msra.mxu0 0
        %799 = vmatprep.subr.bf16.mxu0 0
        %800 = vmatpush1.bf16.msra.mxu0 0
        %801 = vmatprep.subr.bf16.mxu0 0
        %802 = vmatpush1.bf16.msra.mxu0 0
        %803 = vmatprep.subr.bf16.mxu0 0
        %804 = vmatpush1.bf16.msra.mxu0 0
        %805 = vmatprep.subr.bf16.mxu0 0
        %806 = vmatpush1.bf16.msra.mxu0 0
        %807 = vmatprep.subr.bf16.mxu0 0
        %808 = vmatpush1.bf16.msra.mxu0 0
        %809 = vmatprep.subr.bf16.mxu0 0
        %810 = vmatpush1.bf16.msra.mxu0 0
        %811 = vmatprep.subr.bf16.mxu0 0
        %812 = vmatpush1.bf16.msra.mxu0 0
        %813 = vmatprep.subr.bf16.mxu0 0
        %814 = vmatpush1.bf16.msra.mxu0 0
        %815 = vmatprep.subr.bf16.mxu0 0
        %816 = vmatpush1.bf16.msra.mxu0 0
        %817 = vmatprep.subr.bf16.mxu0 0
        %818 = vmatpush1.bf16.msra.mxu0 0
        %819 = vmatprep.subr.bf16.mxu0 0
        %820 = vmatpush1.bf16.msra.mxu0 0
        %821 = vmatprep.mubr.bf16.mxu0 0
        %822 = vmatmul.mubr.bf16.gmra.mrb[0].mxu0 %v783
        %v823 = vpop.f32.mrb[0].mxu0
        %v824 = vadd.f32 0.0, %v823
        %v825 = vpop.f32.mrb[0].mxu0
        %v826 = vpop.f32.mrb[0].mxu0
        %v827 = vpop.f32.mrb[0].mxu0
        %828 = vdwg.mxu0
        %s829 = scalar_lea.vmem %s3, 64
        %v830 = vld [vmem:[%s829] sm:$0xf]
        %v831 = vld [vmem:[%s829 + $0x4] sm:$0xf]
        %v832 = vld [vmem:[%s829 + $0x8] sm:$0xf]
        %v833 = vld [vmem:[%s829 + $0xc] sm:$0xf]
        %v834 = vld [vmem:[%s829 + $0x10] sm:$0xf]
        %v835 = vld [vmem:[%s829 + $0x14] sm:$0xf]
        %v836 = vld [vmem:[%s829 + $0x18] sm:$0xf]
        %v837 = vld [vmem:[%s829 + $0x1c] sm:$0xf]
        %v838 = vld [vmem:[%s829 + $0x20] sm:$0xf]
        %v839 = vld [vmem:[%s829 + $0x24] sm:$0xf]
        %v840 = vld [vmem:[%s829 + $0x28] sm:$0xf]
        %v841 = vld [vmem:[%s829 + $0x2c] sm:$0xf]
        %v842 = vld [vmem:[%s829 + $0x30] sm:$0xf]
        %v843 = vld [vmem:[%s829 + $0x34] sm:$0xf]
        %v844 = vld [vmem:[%s829 + $0x38] sm:$0xf]
        %v845 = vld [vmem:[%s829 + $0x3c] sm:$0xf]
        %s846 = scalar_lea.vmem %s4, 1
        %v847 = vld [vmem:[%s846] sm:$0x1]
        %v849 = vlaneseq
        %v850 = vshrl.u32 %v849, 7
        %v851 = vsub.s32 0, %v850
        %v852 = vrot.slane %v847, %v851
        %v870 = vunpack.c.l.b16 %v830
        %v871 = vunpack.c.l.b16 %v831
        %v872 = vunpack.c.l.b16 %v832
        %v873 = vunpack.c.l.b16 %v833
        %v874 = vunpack.c.l.b16 %v834
        %v875 = vunpack.c.l.b16 %v835
        %v876 = vunpack.c.l.b16 %v836
        %v877 = vunpack.c.l.b16 %v837
        %v878 = vunpack.c.l.b16 %v838
        %v879 = vunpack.c.l.b16 %v839
        %v880 = vunpack.c.l.b16 %v840
        %v881 = vunpack.c.l.b16 %v841
        %v882 = vunpack.c.l.b16 %v842
        %v883 = vunpack.c.l.b16 %v843
        %v884 = vunpack.c.l.b16 %v844
        %v885 = vunpack.c.l.b16 %v845
        %v886 = vpack.c.b16 %v871, %v870
        %v887 = vpack.c.b16 %v873, %v872
        %v888 = vpack.c.b16 %v875, %v874
        %v889 = vpack.c.b16 %v877, %v876
        %v890 = vpack.c.b16 %v879, %v878
        %v891 = vpack.c.b16 %v881, %v880
        %v892 = vpack.c.b16 %v883, %v882
        %v893 = vpack.c.b16 %v885, %v884
        %902 = vmatprep.subr.bf16.mxu0 0
        %903 = vmatpush1.bf16.msra.mxu0 %v886
        %904 = vmatprep.subr.bf16.mxu0 0
        %905 = vmatpush1.bf16.msra.mxu0 %v887
        %906 = vmatprep.subr.bf16.mxu0 0
        %907 = vmatpush1.bf16.msra.mxu0 %v888
        %908 = vmatprep.subr.bf16.mxu0 0
        %909 = vmatpush1.bf16.msra.mxu0 %v889
        %910 = vmatprep.subr.bf16.mxu0 0
        %911 = vmatpush1.bf16.msra.mxu0 %v890
        %912 = vmatprep.subr.bf16.mxu0 0
        %913 = vmatpush1.bf16.msra.mxu0 %v891
        %914 = vmatprep.subr.bf16.mxu0 0
        %915 = vmatpush1.bf16.msra.mxu0 %v892
        %916 = vmatprep.subr.bf16.mxu0 0
        %917 = vmatpush1.bf16.msra.mxu0 %v893
        %918 = vmatprep.subr.bf16.mxu0 0
        %919 = vmatpush1.bf16.msra.mxu0 0
        %920 = vmatprep.subr.bf16.mxu0 0
        %921 = vmatpush1.bf16.msra.mxu0 0
        %922 = vmatprep.subr.bf16.mxu0 0
        %923 = vmatpush1.bf16.msra.mxu0 0
        %924 = vmatprep.subr.bf16.mxu0 0
        %925 = vmatpush1.bf16.msra.mxu0 0
        %926 = vmatprep.subr.bf16.mxu0 0
        %927 = vmatpush1.bf16.msra.mxu0 0
        %928 = vmatprep.subr.bf16.mxu0 0
        %929 = vmatpush1.bf16.msra.mxu0 0
        %930 = vmatprep.subr.bf16.mxu0 0
        %931 = vmatpush1.bf16.msra.mxu0 0
        %932 = vmatprep.subr.bf16.mxu0 0
        %933 = vmatpush1.bf16.msra.mxu0 0
        %934 = vmatprep.mubr.bf16.mxu0 0
        %935 = vmatmul.mubr.bf16.gmra.mrb[0].mxu0 %v606
        %v936 = vpop.f32.mrb[0].mxu0
        %v937 = vadd.f32 %v852, %v936
        %v938 = vpop.f32.mrb[0].mxu0
        %v939 = vpop.f32.mrb[0].mxu0
        %v940 = vpop.f32.mrb[0].mxu0
        %941 = vdwg.mxu0
        %v942 = vmul.f32 %v937, 0.17677669
        %s943 = scalar_lea.vmem %s538, 4 [#allocation5]
        %v944 = vld [vmem:[%s943] sm:$0xf]
        %s945 = scalar_lea.vmem %s547, 4 [#allocation7]
        %v946 = vld [vmem:[%s945] sm:$0xf]
        %v947 = vpack.c.bf16 %v942, %v942
        %v949 = vsel %vm722, %v947, 0
        %v952 = vsel %vm722, %v944, 0
        %954 = vmatprep.subr.bf16.mxu0 0
        %955 = vmatpush1.bf16.xpose.msra.mxu0 %v952
        %956 = vmatprep.subr.bf16.mxu0 0
        %957 = vmatpush1.bf16.xpose.msra.mxu0 0
        %958 = vmatprep.subr.bf16.mxu0 0
        %959 = vmatpush1.bf16.xpose.msra.mxu0 0
        %960 = vmatprep.subr.bf16.mxu0 0
        %961 = vmatpush1.bf16.xpose.msra.mxu0 0
        %962 = vmatprep.subr.bf16.mxu0 0
        %963 = vmatpush1.bf16.xpose.msra.mxu0 0
        %964 = vmatprep.subr.bf16.mxu0 0
        %965 = vmatpush1.bf16.xpose.msra.mxu0 0
        %966 = vmatprep.subr.bf16.mxu0 0
        %967 = vmatpush1.bf16.xpose.msra.mxu0 0
        %968 = vmatprep.subr.bf16.mxu0 0
        %969 = vmatpush1.bf16.xpose.msra.mxu0 0
        %970 = vmatprep.subr.bf16.mxu0 0
        %971 = vmatpush1.bf16.xpose.msra.mxu0 0
        %972 = vmatprep.subr.bf16.mxu0 0
        %973 = vmatpush1.bf16.xpose.msra.mxu0 0
        %974 = vmatprep.subr.bf16.mxu0 0
        %975 = vmatpush1.bf16.xpose.msra.mxu0 0
        %976 = vmatprep.subr.bf16.mxu0 0
        %977 = vmatpush1.bf16.xpose.msra.mxu0 0
        %978 = vmatprep.subr.bf16.mxu0 0
        %979 = vmatpush1.bf16.xpose.msra.mxu0 0
        %980 = vmatprep.subr.bf16.mxu0 0
        %981 = vmatpush1.bf16.xpose.msra.mxu0 0
        %982 = vmatprep.subr.bf16.mxu0 0
        %983 = vmatpush1.bf16.xpose.msra.mxu0 0
        %984 = vmatprep.subr.bf16.mxu0 0
        %985 = vmatpush1.bf16.xpose.msra.mxu0 0
        %986 = vmatprep.mubr.bf16.mxu0 0
        %987 = vmatmul.mubr.bf16.gmra.mrb[0].mxu0 %v949
        %v988 = vpop.f32.mrb[0].mxu0
        %v989 = vadd.f32 0.0, %v988
        %v990 = vpop.f32.mrb[0].mxu0
        %v991 = vpop.f32.mrb[0].mxu0
        %v992 = vpop.f32.mrb[0].mxu0
        %993 = vdwg.mxu0
        %v994 = vsel %vm769, %v989, -inf
        %995 = vmax.xlane.f32.xlu0 %v994
        %v996 = vpop.xlane.xlu0 %995
        %v997 = vsub.f32 %v989, %v996
        %v998 = vmul.f32 %v997, 1.442695
        %v999 = vpow.pop %v998
        %v1000 = vsel %vm769, %v999, 0.0
        %1001 = vadd.xlane.f32.xlu0 %v1000
        %v1002 = vpop.xlane.xlu0 %1001
        %v1003 = vrcp.pop %v1002
        %v1004 = vmul.f32 %v999, %v1003
        %v1005 = vpack.c.bf16 %v1004, %v1004
        %v1007 = vsel %vm769, %v1005, 0
        %v1010 = vsel %vm785, %v946, 0
        %1012 = vmatprep.subr.bf16.mxu0 0
        %1013 = vmatpush1.bf16.msra.mxu0 %v1010
        %1014 = vmatprep.subr.bf16.mxu0 0
        %1015 = vmatpush1.bf16.msra.mxu0 0
        %1016 = vmatprep.subr.bf16.mxu0 0
        %1017 = vmatpush1.bf16.msra.mxu0 0
        %1018 = vmatprep.subr.bf16.mxu0 0
        %1019 = vmatpush1.bf16.msra.mxu0 0
        %1020 = vmatprep.subr.bf16.mxu0 0
        %1021 = vmatpush1.bf16.msra.mxu0 0
        %1022 = vmatprep.subr.bf16.mxu0 0
        %1023 = vmatpush1.bf16.msra.mxu0 0
        %1024 = vmatprep.subr.bf16.mxu0 0
        %1025 = vmatpush1.bf16.msra.mxu0 0
        %1026 = vmatprep.subr.bf16.mxu0 0
        %1027 = vmatpush1.bf16.msra.mxu0 0
        %1028 = vmatprep.subr.bf16.mxu0 0
        %1029 = vmatpush1.bf16.msra.mxu0 0
        %1030 = vmatprep.subr.bf16.mxu0 0
        %1031 = vmatpush1.bf16.msra.mxu0 0
        %1032 = vmatprep.subr.bf16.mxu0 0
        %1033 = vmatpush1.bf16.msra.mxu0 0
        %1034 = vmatprep.subr.bf16.mxu0 0
        %1035 = vmatpush1.bf16.msra.mxu0 0
        %1036 = vmatprep.subr.bf16.mxu0 0
        %1037 = vmatpush1.bf16.msra.mxu0 0
        %1038 = vmatprep.subr.bf16.mxu0 0
        %1039 = vmatpush1.bf16.msra.mxu0 0
        %1040 = vmatprep.subr.bf16.mxu0 0
        %1041 = vmatpush1.bf16.msra.mxu0 0
        %1042 = vmatprep.subr.bf16.mxu0 0
        %1043 = vmatpush1.bf16.msra.mxu0 0
        %1044 = vmatprep.mubr.bf16.mxu0 0
        %1045 = vmatmul.mubr.bf16.gmra.mrb[0].mxu0 %v1007
        %v1046 = vpop.f32.mrb[0].mxu0
        %v1047 = vadd.f32 0.0, %v1046
        %v1048 = vpop.f32.mrb[0].mxu0
        %v1049 = vpop.f32.mrb[0].mxu0
        %v1050 = vpop.f32.mrb[0].mxu0
        %1051 = vdwg.mxu0
        %s1052 = scalar_lea.vmem %s3, 128
        %v1053 = vld [vmem:[%s1052] sm:$0xf]
        %v1054 = vld [vmem:[%s1052 + $0x4] sm:$0xf]
        %v1055 = vld [vmem:[%s1052 + $0x8] sm:$0xf]
        %v1056 = vld [vmem:[%s1052 + $0xc] sm:$0xf]
        %v1057 = vld [vmem:[%s1052 + $0x10] sm:$0xf]
        %v1058 = vld [vmem:[%s1052 + $0x14] sm:$0xf]
        %v1059 = vld [vmem:[%s1052 + $0x18] sm:$0xf]
        %v1060 = vld [vmem:[%s1052 + $0x1c] sm:$0xf]
        %v1061 = vld [vmem:[%s1052 + $0x20] sm:$0xf]
        %v1062 = vld [vmem:[%s1052 + $0x24] sm:$0xf]
        %v1063 = vld [vmem:[%s1052 + $0x28] sm:$0xf]
        %v1064 = vld [vmem:[%s1052 + $0x2c] sm:$0xf]
        %v1065 = vld [vmem:[%s1052 + $0x30] sm:$0xf]
        %v1066 = vld [vmem:[%s1052 + $0x34] sm:$0xf]
        %v1067 = vld [vmem:[%s1052 + $0x38] sm:$0xf]
        %v1068 = vld [vmem:[%s1052 + $0x3c] sm:$0xf]
        %s1069 = scalar_lea.vmem %s4, 2
        %v1070 = vld [vmem:[%s1069] sm:$0x1]
        %v1072 = vlaneseq
        %v1073 = vshrl.u32 %v1072, 7
        %v1074 = vsub.s32 0, %v1073
        %v1075 = vrot.slane %v1070, %v1074
        %v1093 = vunpack.c.l.b16 %v1053
        %v1094 = vunpack.c.l.b16 %v1054
        %v1095 = vunpack.c.l.b16 %v1055
        %v1096 = vunpack.c.l.b16 %v1056
        %v1097 = vunpack.c.l.b16 %v1057
        %v1098 = vunpack.c.l.b16 %v1058
        %v1099 = vunpack.c.l.b16 %v1059
        %v1100 = vunpack.c.l.b16 %v1060
        %v1101 = vunpack.c.l.b16 %v1061
        %v1102 = vunpack.c.l.b16 %v1062
        %v1103 = vunpack.c.l.b16 %v1063
        %v1104 = vunpack.c.l.b16 %v1064
        %v1105 = vunpack.c.l.b16 %v1065
        %v1106 = vunpack.c.l.b16 %v1066
        %v1107 = vunpack.c.l.b16 %v1067
        %v1108 = vunpack.c.l.b16 %v1068
        %v1109 = vpack.c.b16 %v1094, %v1093
        %v1110 = vpack.c.b16 %v1096, %v1095
        %v1111 = vpack.c.b16 %v1098, %v1097
        %v1112 = vpack.c.b16 %v1100, %v1099
        %v1113 = vpack.c.b16 %v1102, %v1101
        %v1114 = vpack.c.b16 %v1104, %v1103
        %v1115 = vpack.c.b16 %v1106, %v1105
        %v1116 = vpack.c.b16 %v1108, %v1107
        %1125 = vmatprep.subr.bf16.mxu0 0
        %1126 = vmatpush1.bf16.msra.mxu0 %v1109
        %1127 = vmatprep.subr.bf16.mxu0 0
        %1128 = vmatpush1.bf16.msra.mxu0 %v1110
        %1129 = vmatprep.subr.bf16.mxu0 0
        %1130 = vmatpush1.bf16.msra.mxu0 %v1111
        %1131 = vmatprep.subr.bf16.mxu0 0
        %1132 = vmatpush1.bf16.msra.mxu0 %v1112
        %1133 = vmatprep.subr.bf16.mxu0 0
        %1134 = vmatpush1.bf16.msra.mxu0 %v1113
        %1135 = vmatprep.subr.bf16.mxu0 0
        %1136 = vmatpush1.bf16.msra.mxu0 %v1114
        %1137 = vmatprep.subr.bf16.mxu0 0
        %1138 = vmatpush1.bf16.msra.mxu0 %v1115
        %1139 = vmatprep.subr.bf16.mxu0 0
        %1140 = vmatpush1.bf16.msra.mxu0 %v1116
        %1141 = vmatprep.subr.bf16.mxu0 0
        %1142 = vmatpush1.bf16.msra.mxu0 0
        %1143 = vmatprep.subr.bf16.mxu0 0
        %1144 = vmatpush1.bf16.msra.mxu0 0
        %1145 = vmatprep.subr.bf16.mxu0 0
        %1146 = vmatpush1.bf16.msra.mxu0 0
        %1147 = vmatprep.subr.bf16.mxu0 0
        %1148 = vmatpush1.bf16.msra.mxu0 0
        %1149 = vmatprep.subr.bf16.mxu0 0
        %1150 = vmatpush1.bf16.msra.mxu0 0
        %1151 = vmatprep.subr.bf16.mxu0 0
        %1152 = vmatpush1.bf16.msra.mxu0 0
        %1153 = vmatprep.subr.bf16.mxu0 0
        %1154 = vmatpush1.bf16.msra.mxu0 0
        %1155 = vmatprep.subr.bf16.mxu0 0
        %1156 = vmatpush1.bf16.msra.mxu0 0
        %1157 = vmatprep.mubr.bf16.mxu0 0
        %1158 = vmatmul.mubr.bf16.gmra.mrb[0].mxu0 %v606
        %v1159 = vpop.f32.mrb[0].mxu0
        %v1160 = vadd.f32 %v1075, %v1159
        %v1161 = vpop.f32.mrb[0].mxu0
        %v1162 = vpop.f32.mrb[0].mxu0
        %v1163 = vpop.f32.mrb[0].mxu0
        %1164 = vdwg.mxu0
        %v1165 = vmul.f32 %v1160, 0.17677669
        %s1166 = scalar_lea.vmem %s538, 8 [#allocation5]
        %v1167 = vld [vmem:[%s1166] sm:$0xf]
        %s1168 = scalar_lea.vmem %s547, 8 [#allocation7]
        %v1169 = vld [vmem:[%s1168] sm:$0xf]
        %v1170 = vpack.c.bf16 %v1165, %v1165
        %v1172 = vsel %vm722, %v1170, 0
        %v1175 = vsel %vm722, %v1167, 0
        %1177 = vmatprep.subr.bf16.mxu0 0
        %1178 = vmatpush1.bf16.xpose.msra.mxu0 %v1175
        %1179 = vmatprep.subr.bf16.mxu0 0
        %1180 = vmatpush1.bf16.xpose.msra.mxu0 0
        %1181 = vmatprep.subr.bf16.mxu0 0
        %1182 = vmatpush1.bf16.xpose.msra.mxu0 0
        %1183 = vmatprep.subr.bf16.mxu0 0
        %1184 = vmatpush1.bf16.xpose.msra.mxu0 0
        %1185 = vmatprep.subr.bf16.mxu0 0
        %1186 = vmatpush1.bf16.xpose.msra.mxu0 0
        %1187 = vmatprep.subr.bf16.mxu0 0
        %1188 = vmatpush1.bf16.xpose.msra.mxu0 0
        %1189 = vmatprep.subr.bf16.mxu0 0
        %1190 = vmatpush1.bf16.xpose.msra.mxu0 0
        %1191 = vmatprep.subr.bf16.mxu0 0
        %1192 = vmatpush1.bf16.xpose.msra.mxu0 0
        %1193 = vmatprep.subr.bf16.mxu0 0
        %1194 = vmatpush1.bf16.xpose.msra.mxu0 0
        %1195 = vmatprep.subr.bf16.mxu0 0
        %1196 = vmatpush1.bf16.xpose.msra.mxu0 0
        %1197 = vmatprep.subr.bf16.mxu0 0
        %1198 = vmatpush1.bf16.xpose.msra.mxu0 0
        %1199 = vmatprep.subr.bf16.mxu0 0
        %1200 = vmatpush1.bf16.xpose.msra.mxu0 0
        %1201 = vmatprep.subr.bf16.mxu0 0
        %1202 = vmatpush1.bf16.xpose.msra.mxu0 0
        %1203 = vmatprep.subr.bf16.mxu0 0
        %1204 = vmatpush1.bf16.xpose.msra.mxu0 0
        %1205 = vmatprep.subr.bf16.mxu0 0
        %1206 = vmatpush1.bf16.xpose.msra.mxu0 0
        %1207 = vmatprep.subr.bf16.mxu0 0
        %1208 = vmatpush1.bf16.xpose.msra.mxu0 0
        %1209 = vmatprep.mubr.bf16.mxu0 0
        %1210 = vmatmul.mubr.bf16.gmra.mrb[0].mxu0 %v1172
        %v1211 = vpop.f32.mrb[0].mxu0
        %v1212 = vadd.f32 0.0, %v1211
        %v1213 = vpop.f32.mrb[0].mxu0
        %v1214 = vpop.f32.mrb[0].mxu0
        %v1215 = vpop.f32.mrb[0].mxu0
        %1216 = vdwg.mxu0
        %v1217 = vsel %vm769, %v1212, -inf
        %1218 = vmax.xlane.f32.xlu0 %v1217
        %v1219 = vpop.xlane.xlu0 %1218
        %v1220 = vsub.f32 %v1212, %v1219
        %v1221 = vmul.f32 %v1220, 1.442695
        %v1222 = vpow.pop %v1221
        %v1223 = vsel %vm769, %v1222, 0.0
        %1224 = vadd.xlane.f32.xlu0 %v1223
        %v1225 = vpop.xlane.xlu0 %1224
        %v1226 = vrcp.pop %v1225
        %v1227 = vmul.f32 %v1222, %v1226
        %v1228 = vpack.c.bf16 %v1227, %v1227
        %v1230 = vsel %vm769, %v1228, 0
        %v1233 = vsel %vm785, %v1169, 0
        %1235 = vmatprep.subr.bf16.mxu0 0
        %1236 = vmatpush1.bf16.msra.mxu0 %v1233
        %1237 = vmatprep.subr.bf16.mxu0 0
        %1238 = vmatpush1.bf16.msra.mxu0 0
        %1239 = vmatprep.subr.bf16.mxu0 0
        %1240 = vmatpush1.bf16.msra.mxu0 0
        %1241 = vmatprep.subr.bf16.mxu0 0
        %1242 = vmatpush1.bf16.msra.mxu0 0
        %1243 = vmatprep.subr.bf16.mxu0 0
        %1244 = vmatpush1.bf16.msra.mxu0 0
        %1245 = vmatprep.subr.bf16.mxu0 0
        %1246 = vmatpush1.bf16.msra.mxu0 0
        %1247 = vmatprep.subr.bf16.mxu0 0
        %1248 = vmatpush1.bf16.msra.mxu0 0
        %1249 = vmatprep.subr.bf16.mxu0 0
        %1250 = vmatpush1.bf16.msra.mxu0 0
        %1251 = vmatprep.subr.bf16.mxu0 0
        %1252 = vmatpush1.bf16.msra.mxu0 0
        %1253 = vmatprep.subr.bf16.mxu0 0
        %1254 = vmatpush1.bf16.msra.mxu0 0
        %1255 = vmatprep.subr.bf16.mxu0 0
        %1256 = vmatpush1.bf16.msra.mxu0 0
        %1257 = vmatprep.subr.bf16.mxu0 0
        %1258 = vmatpush1.bf16.msra.mxu0 0
        %1259 = vmatprep.subr.bf16.mxu0 0
        %1260 = vmatpush1.bf16.msra.mxu0 0
        %1261 = vmatprep.subr.bf16.mxu0 0
        %1262 = vmatpush1.bf16.msra.mxu0 0
        %1263 = vmatprep.subr.bf16.mxu0 0
        %1264 = vmatpush1.bf16.msra.mxu0 0
        %1265 = vmatprep.subr.bf16.mxu0 0
        %1266 = vmatpush1.bf16.msra.mxu0 0
        %1267 = vmatprep.mubr.bf16.mxu0 0
        %1268 = vmatmul.mubr.bf16.gmra.mrb[0].mxu0 %v1230
        %v1269 = vpop.f32.mrb[0].mxu0
        %v1270 = vadd.f32 0.0, %v1269
        %v1271 = vpop.f32.mrb[0].mxu0
        %v1272 = vpop.f32.mrb[0].mxu0
        %v1273 = vpop.f32.mrb[0].mxu0
        %1274 = vdwg.mxu0
        %s1275 = scalar_lea.vmem %s3, 192
        %v1276 = vld [vmem:[%s1275] sm:$0xf]
        %v1277 = vld [vmem:[%s1275 + $0x4] sm:$0xf]
        %v1278 = vld [vmem:[%s1275 + $0x8] sm:$0xf]
        %v1279 = vld [vmem:[%s1275 + $0xc] sm:$0xf]
        %v1280 = vld [vmem:[%s1275 + $0x10] sm:$0xf]
        %v1281 = vld [vmem:[%s1275 + $0x14] sm:$0xf]
        %v1282 = vld [vmem:[%s1275 + $0x18] sm:$0xf]
        %v1283 = vld [vmem:[%s1275 + $0x1c] sm:$0xf]
        %v1284 = vld [vmem:[%s1275 + $0x20] sm:$0xf]
        %v1285 = vld [vmem:[%s1275 + $0x24] sm:$0xf]
        %v1286 = vld [vmem:[%s1275 + $0x28] sm:$0xf]
        %v1287 = vld [vmem:[%s1275 + $0x2c] sm:$0xf]
        %v1288 = vld [vmem:[%s1275 + $0x30] sm:$0xf]
        %v1289 = vld [vmem:[%s1275 + $0x34] sm:$0xf]
        %v1290 = vld [vmem:[%s1275 + $0x38] sm:$0xf]
        %v1291 = vld [vmem:[%s1275 + $0x3c] sm:$0xf]
        %s1292 = scalar_lea.vmem %s4, 3
        %v1293 = vld [vmem:[%s1292] sm:$0x1]
        %v1295 = vlaneseq
        %v1296 = vshrl.u32 %v1295, 7
        %v1297 = vsub.s32 0, %v1296
        %v1298 = vrot.slane %v1293, %v1297
        %v1316 = vunpack.c.l.b16 %v1276
        %v1317 = vunpack.c.l.b16 %v1277
        %v1318 = vunpack.c.l.b16 %v1278
        %v1319 = vunpack.c.l.b16 %v1279
        %v1320 = vunpack.c.l.b16 %v1280
        %v1321 = vunpack.c.l.b16 %v1281
        %v1322 = vunpack.c.l.b16 %v1282
        %v1323 = vunpack.c.l.b16 %v1283
        %v1324 = vunpack.c.l.b16 %v1284
        %v1325 = vunpack.c.l.b16 %v1285
        %v1326 = vunpack.c.l.b16 %v1286
        %v1327 = vunpack.c.l.b16 %v1287
        %v1328 = vunpack.c.l.b16 %v1288
        %v1329 = vunpack.c.l.b16 %v1289
        %v1330 = vunpack.c.l.b16 %v1290
        %v1331 = vunpack.c.l.b16 %v1291
        %v1332 = vpack.c.b16 %v1317, %v1316
        %v1333 = vpack.c.b16 %v1319, %v1318
        %v1334 = vpack.c.b16 %v1321, %v1320
        %v1335 = vpack.c.b16 %v1323, %v1322
        %v1336 = vpack.c.b16 %v1325, %v1324
        %v1337 = vpack.c.b16 %v1327, %v1326
        %v1338 = vpack.c.b16 %v1329, %v1328
        %v1339 = vpack.c.b16 %v1331, %v1330
        %1348 = vmatprep.subr.bf16.mxu0 0
        %1349 = vmatpush1.bf16.msra.mxu0 %v1332
        %1350 = vmatprep.subr.bf16.mxu0 0
        %1351 = vmatpush1.bf16.msra.mxu0 %v1333
        %1352 = vmatprep.subr.bf16.mxu0 0
        %1353 = vmatpush1.bf16.msra.mxu0 %v1334
        %1354 = vmatprep.subr.bf16.mxu0 0
        %1355 = vmatpush1.bf16.msra.mxu0 %v1335
        %1356 = vmatprep.subr.bf16.mxu0 0
        %1357 = vmatpush1.bf16.msra.mxu0 %v1336
        %1358 = vmatprep.subr.bf16.mxu0 0
        %1359 = vmatpush1.bf16.msra.mxu0 %v1337
        %1360 = vmatprep.subr.bf16.mxu0 0
        %1361 = vmatpush1.bf16.msra.mxu0 %v1338
        %1362 = vmatprep.subr.bf16.mxu0 0
        %1363 = vmatpush1.bf16.msra.mxu0 %v1339
        %1364 = vmatprep.subr.bf16.mxu0 0
        %1365 = vmatpush1.bf16.msra.mxu0 0
        %1366 = vmatprep.subr.bf16.mxu0 0
        %1367 = vmatpush1.bf16.msra.mxu0 0
        %1368 = vmatprep.subr.bf16.mxu0 0
        %1369 = vmatpush1.bf16.msra.mxu0 0
        %1370 = vmatprep.subr.bf16.mxu0 0
        %1371 = vmatpush1.bf16.msra.mxu0 0
        %1372 = vmatprep.subr.bf16.mxu0 0
        %1373 = vmatpush1.bf16.msra.mxu0 0
        %1374 = vmatprep.subr.bf16.mxu0 0
        %1375 = vmatpush1.bf16.msra.mxu0 0
        %1376 = vmatprep.subr.bf16.mxu0 0
        %1377 = vmatpush1.bf16.msra.mxu0 0
        %1378 = vmatprep.subr.bf16.mxu0 0
        %1379 = vmatpush1.bf16.msra.mxu0 0
        %1380 = vmatprep.mubr.bf16.mxu0 0
        %1381 = vmatmul.mubr.bf16.gmra.mrb[0].mxu0 %v606
        %v1382 = vpop.f32.mrb[0].mxu0
        %v1383 = vadd.f32 %v1298, %v1382
        %v1384 = vpop.f32.mrb[0].mxu0
        %v1385 = vpop.f32.mrb[0].mxu0
        %v1386 = vpop.f32.mrb[0].mxu0
        %1387 = vdwg.mxu0
        %v1388 = vmul.f32 %v1383, 0.17677669
        %s1389 = scalar_lea.vmem %s538, 12 [#allocation5]
        %v1390 = vld [vmem:[%s1389] sm:$0xf]
        %s1391 = scalar_lea.vmem %s547, 12 [#allocation7]
        %v1392 = vld [vmem:[%s1391] sm:$0xf]
        %v1393 = vpack.c.bf16 %v1388, %v1388
        %v1395 = vsel %vm722, %v1393, 0
        %v1398 = vsel %vm722, %v1390, 0
        %1400 = vmatprep.subr.bf16.mxu0 0
        %1401 = vmatpush1.bf16.xpose.msra.mxu0 %v1398
        %1402 = vmatprep.subr.bf16.mxu0 0
        %1403 = vmatpush1.bf16.xpose.msra.mxu0 0
        %1404 = vmatprep.subr.bf16.mxu0 0
        %1405 = vmatpush1.bf16.xpose.msra.mxu0 0
        %1406 = vmatprep.subr.bf16.mxu0 0
        %1407 = vmatpush1.bf16.xpose.msra.mxu0 0
        %1408 = vmatprep.subr.bf16.mxu0 0
        %1409 = vmatpush1.bf16.xpose.msra.mxu0 0
        %1410 = vmatprep.subr.bf16.mxu0 0
        %1411 = vmatpush1.bf16.xpose.msra.mxu0 0
        %1412 = vmatprep.subr.bf16.mxu0 0
        %1413 = vmatpush1.bf16.xpose.msra.mxu0 0
        %1414 = vmatprep.subr.bf16.mxu0 0
        %1415 = vmatpush1.bf16.xpose.msra.mxu0 0
        %1416 = vmatprep.subr.bf16.mxu0 0
        %1417 = vmatpush1.bf16.xpose.msra.mxu0 0
        %1418 = vmatprep.subr.bf16.mxu0 0
        %1419 = vmatpush1.bf16.xpose.msra.mxu0 0
        %1420 = vmatprep.subr.bf16.mxu0 0
        %1421 = vmatpush1.bf16.xpose.msra.mxu0 0
        %1422 = vmatprep.subr.bf16.mxu0 0
        %1423 = vmatpush1.bf16.xpose.msra.mxu0 0
        %1424 = vmatprep.subr.bf16.mxu0 0
        %1425 = vmatpush1.bf16.xpose.msra.mxu0 0
        %1426 = vmatprep.subr.bf16.mxu0 0
        %1427 = vmatpush1.bf16.xpose.msra.mxu0 0
        %1428 = vmatprep.subr.bf16.mxu0 0
        %1429 = vmatpush1.bf16.xpose.msra.mxu0 0
        %1430 = vmatprep.subr.bf16.mxu0 0
        %1431 = vmatpush1.bf16.xpose.msra.mxu0 0
        %1432 = vmatprep.mubr.bf16.mxu0 0
        %1433 = vmatmul.mubr.bf16.gmra.mrb[0].mxu0 %v1395
        %v1434 = vpop.f32.mrb[0].mxu0
        %v1435 = vadd.f32 0.0, %v1434
        %v1436 = vpop.f32.mrb[0].mxu0
        %v1437 = vpop.f32.mrb[0].mxu0
        %v1438 = vpop.f32.mrb[0].mxu0
        %1439 = vdwg.mxu0
        %v1440 = vsel %vm769, %v1435, -inf
        %1441 = vmax.xlane.f32.xlu0 %v1440
        %v1442 = vpop.xlane.xlu0 %1441
        %v1443 = vsub.f32 %v1435, %v1442
        %v1444 = vmul.f32 %v1443, 1.442695
        %v1445 = vpow.pop %v1444
        %v1446 = vsel %vm769, %v1445, 0.0
        %1447 = vadd.xlane.f32.xlu0 %v1446
        %v1448 = vpop.xlane.xlu0 %1447
        %v1449 = vrcp.pop %v1448
        %v1450 = vmul.f32 %v1445, %v1449
        %v1451 = vpack.c.bf16 %v1450, %v1450
        %v1453 = vsel %vm769, %v1451, 0
        %v1456 = vsel %vm785, %v1392, 0
        %1458 = vmatprep.subr.bf16.mxu0 0
        %1459 = vmatpush1.bf16.msra.mxu0 %v1456
        %1460 = vmatprep.subr.bf16.mxu0 0
        %1461 = vmatpush1.bf16.msra.mxu0 0
        %1462 = vmatprep.subr.bf16.mxu0 0
        %1463 = vmatpush1.bf16.msra.mxu0 0
        %1464 = vmatprep.subr.bf16.mxu0 0
        %1465 = vmatpush1.bf16.msra.mxu0 0
        %1466 = vmatprep.subr.bf16.mxu0 0
        %1467 = vmatpush1.bf16.msra.mxu0 0
        %1468 = vmatprep.subr.bf16.mxu0 0
        %1469 = vmatpush1.bf16.msra.mxu0 0
        %1470 = vmatprep.subr.bf16.mxu0 0
        %1471 = vmatpush1.bf16.msra.mxu0 0
        %1472 = vmatprep.subr.bf16.mxu0 0
        %1473 = vmatpush1.bf16.msra.mxu0 0
        %1474 = vmatprep.subr.bf16.mxu0 0
        %1475 = vmatpush1.bf16.msra.mxu0 0
        %1476 = vmatprep.subr.bf16.mxu0 0
        %1477 = vmatpush1.bf16.msra.mxu0 0
        %1478 = vmatprep.subr.bf16.mxu0 0
        %1479 = vmatpush1.bf16.msra.mxu0 0
        %1480 = vmatprep.subr.bf16.mxu0 0
        %1481 = vmatpush1.bf16.msra.mxu0 0
        %1482 = vmatprep.subr.bf16.mxu0 0
        %1483 = vmatpush1.bf16.msra.mxu0 0
        %1484 = vmatprep.subr.bf16.mxu0 0
        %1485 = vmatpush1.bf16.msra.mxu0 0
        %1486 = vmatprep.subr.bf16.mxu0 0
        %1487 = vmatpush1.bf16.msra.mxu0 0
        %1488 = vmatprep.subr.bf16.mxu0 0
        %1489 = vmatpush1.bf16.msra.mxu0 0
        %1490 = vmatprep.mubr.bf16.mxu0 0
        %1491 = vmatmul.mubr.bf16.gmra.mrb[0].mxu0 %v1453
        %v1492 = vpop.f32.mrb[0].mxu0
        %v1493 = vadd.f32 0.0, %v1492
        %v1494 = vpop.f32.mrb[0].mxu0
        %v1495 = vpop.f32.mrb[0].mxu0
        %v1496 = vpop.f32.mrb[0].mxu0
        %1497 = vdwg.mxu0
        %1499 = vrot.lane.b32.xlu0 %v1047, 32
        %v1500 = vpop.permute.xlu0 %1499
        %1503 = vrot.lane.b32.xlu0 %v1270, 64
        %v1504 = vpop.permute.xlu0 %1503
        %1507 = vrot.lane.b32.xlu0 %v1493, 96
        %v1508 = vpop.permute.xlu0 %1507
        %v1510 = vsel %vm722, %v824, %v1500
        %vm1511 = vcmask 523264
        %v1512 = vsel %vm1511, %v1510, %v1504
        %vm1513 = vcmask 785408
        %v1514 = vsel %vm1513, %v1512, %v1508
        %v1515 = vpack.c.bf16 %v1514, %v1514
        %v1516 = vld [vmem:[%s5] sm:$0xf]
        %v1517 = vld [vmem:[%s5 + $0x4] sm:$0xf]
        %v1518 = vld [vmem:[%s5 + $0x8] sm:$0xf]
        %v1519 = vld [vmem:[%s5 + $0xc] sm:$0xf]
        %v1520 = vld [vmem:[%s5 + $0x10] sm:$0xf]
        %v1521 = vld [vmem:[%s5 + $0x14] sm:$0xf]
        %v1522 = vld [vmem:[%s5 + $0x18] sm:$0xf]
        %v1523 = vld [vmem:[%s5 + $0x1c] sm:$0xf]
        %v1524 = vld [vmem:[%s5 + $0x20] sm:$0xf]
        %v1525 = vld [vmem:[%s5 + $0x24] sm:$0xf]
        %v1526 = vld [vmem:[%s5 + $0x28] sm:$0xf]
        %v1527 = vld [vmem:[%s5 + $0x2c] sm:$0xf]
        %v1528 = vld [vmem:[%s5 + $0x30] sm:$0xf]
        %v1529 = vld [vmem:[%s5 + $0x34] sm:$0xf]
        %v1530 = vld [vmem:[%s5 + $0x38] sm:$0xf]
        %v1531 = vld [vmem:[%s5 + $0x3c] sm:$0xf]
        %v1532 = vld [vmem:[%s6] sm:$0x1]
        %v1534 = vlaneseq
        %v1535 = vshrl.u32 %v1534, 7
        %v1536 = vsub.s32 0, %v1535
        %v1537 = vrot.slane %v1532, %v1536
        %v1555 = vunpack.c.l.b16 %v1516
        %v1556 = vunpack.c.l.b16 %v1517
        %v1557 = vunpack.c.l.b16 %v1518
        %v1558 = vunpack.c.l.b16 %v1519
        %v1559 = vunpack.c.l.b16 %v1520
        %v1560 = vunpack.c.l.b16 %v1521
        %v1561 = vunpack.c.l.b16 %v1522
        %v1562 = vunpack.c.l.b16 %v1523
        %v1563 = vunpack.c.l.b16 %v1524
        %v1564 = vunpack.c.l.b16 %v1525
        %v1565 = vunpack.c.l.b16 %v1526
        %v1566 = vunpack.c.l.b16 %v1527
        %v1567 = vunpack.c.l.b16 %v1528
        %v1568 = vunpack.c.l.b16 %v1529
        %v1569 = vunpack.c.l.b16 %v1530
        %v1570 = vunpack.c.l.b16 %v1531
        %v1571 = vpack.c.b16 %v1556, %v1555
        %v1572 = vpack.c.b16 %v1558, %v1557
        %v1573 = vpack.c.b16 %v1560, %v1559
        %v1574 = vpack.c.b16 %v1562, %v1561
        %v1575 = vpack.c.b16 %v1564, %v1563
        %v1576 = vpack.c.b16 %v1566, %v1565
        %v1577 = vpack.c.b16 %v1568, %v1567
        %v1578 = vpack.c.b16 %v1570, %v1569
        %1587 = vmatprep.subr.bf16.mxu0 0
        %1588 = vmatpush1.bf16.msra.mxu0 %v1571
        %1589 = vmatprep.subr.bf16.mxu0 0
        %1590 = vmatpush1.bf16.msra.mxu0 %v1572
        %1591 = vmatprep.subr.bf16.mxu0 0
        %1592 = vmatpush1.bf16.msra.mxu0 %v1573
        %1593 = vmatprep.subr.bf16.mxu0 0
        %1594 = vmatpush1.bf16.msra.mxu0 %v1574
        %1595 = vmatprep.subr.bf16.mxu0 0
        %1596 = vmatpush1.bf16.msra.mxu0 %v1575
        %1597 = vmatprep.subr.bf16.mxu0 0
        %1598 = vmatpush1.bf16.msra.mxu0 %v1576
        %1599 = vmatprep.subr.bf16.mxu0 0
        %1600 = vmatpush1.bf16.msra.mxu0 %v1577
        %1601 = vmatprep.subr.bf16.mxu0 0
        %1602 = vmatpush1.bf16.msra.mxu0 %v1578
        %1603 = vmatprep.subr.bf16.mxu0 0
        %1604 = vmatpush1.bf16.msra.mxu0 0
        %1605 = vmatprep.subr.bf16.mxu0 0
        %1606 = vmatpush1.bf16.msra.mxu0 0
        %1607 = vmatprep.subr.bf16.mxu0 0
        %1608 = vmatpush1.bf16.msra.mxu0 0
        %1609 = vmatprep.subr.bf16.mxu0 0
        %1610 = vmatpush1.bf16.msra.mxu0 0
        %1611 = vmatprep.subr.bf16.mxu0 0
        %1612 = vmatpush1.bf16.msra.mxu0 0
        %1613 = vmatprep.subr.bf16.mxu0 0
        %1614 = vmatpush1.bf16.msra.mxu0 0
        %1615 = vmatprep.subr.bf16.mxu0 0
        %1616 = vmatpush1.bf16.msra.mxu0 0
        %1617 = vmatprep.subr.bf16.mxu0 0
        %1618 = vmatpush1.bf16.msra.mxu0 0
        %1619 = vmatprep.mubr.bf16.mxu0 0
        %1620 = vmatmul.mubr.bf16.gmra.mrb[0].mxu0 %v1515
        %v1621 = vpop.f32.mrb[0].mxu0
        %v1622 = vadd.f32 %v1537, %v1621
        %v1623 = vpop.f32.mrb[0].mxu0
        %v1624 = vpop.f32.mrb[0].mxu0
        %v1625 = vpop.f32.mrb[0].mxu0
        %1626 = vdwg.mxu0
        %v1627 = vadd.f32 %v605, %v1622
        %v1628 = vld [vmem:[%s7] sm:$0x1]
        %v1629 = vld [vmem:[%s8] sm:$0x1]
        %1630 = vadd.xlane.f32.xlu0 %v1627
        %v1631 = vpop.xlane.xlu0 %1630
        %v1632 = vrcp.pop 128.0
        %v1633 = vmul.f32 %v1631, %v1632
        %v1634 = vmul.f32 %v1627, %v1627
        %1635 = vadd.xlane.f32.xlu0 %v1634
        %v1636 = vpop.xlane.xlu0 %1635
        %v1637 = vmul.f32 %v1636, %v1632
        %v1638 = vmul.f32 %v1633, %v1633
        %v1639 = vsub.f32 %v1637, %v1638
        %v1640 = vsub.f32 %v1627, %v1633
        %v1641 = vadd.f32 %v1639, 1e-05
        %v1642 = vrsqrt.pop %v1641
        %v1643 = vmul.f32 %v1640, %v1642
        %v1645 = vlaneseq
        %v1646 = vshrl.u32 %v1645, 7
        %v1647 = vsub.s32 0, %v1646
        %v1648 = vrot.slane %v1628, %v1647
        %v1650 = vmul.f32 %v1643, %v1648
        %v1652 = vlaneseq
        %v1653 = vshrl.u32 %v1652, 7
        %v1654 = vsub.s32 0, %v1653
        %v1655 = vrot.slane %v1629, %v1654
        %v1657 = vadd.f32 %v1650, %v1655
        %v1658 = vpack.c.bf16 %v1657, %v1657
        %v1659 = vld [vmem:[%s9] sm:$0xff]
        %v1660 = vld [vmem:[%s9 + $0x8] sm:$0xff]
        %v1661 = vld [vmem:[%s9 + $0x10] sm:$0xff]
        %v1662 = vld [vmem:[%s9 + $0x18] sm:$0xff]
        %v1663 = vld [vmem:[%s9 + $0x20] sm:$0xff]
        %v1664 = vld [vmem:[%s9 + $0x28] sm:$0xff]
        %v1665 = vld [vmem:[%s9 + $0x30] sm:$0xff]
        %v1666 = vld [vmem:[%s9 + $0x38] sm:$0xff]
        %v1667 = vld [vmem:[%s9 + $0x40] sm:$0xff]
        %v1668 = vld [vmem:[%s9 + $0x48] sm:$0xff]
        %v1669 = vld [vmem:[%s9 + $0x50] sm:$0xff]
        %v1670 = vld [vmem:[%s9 + $0x58] sm:$0xff]
        %v1671 = vld [vmem:[%s9 + $0x60] sm:$0xff]
        %v1672 = vld [vmem:[%s9 + $0x68] sm:$0xff]
        %v1673 = vld [vmem:[%s9 + $0x70] sm:$0xff]
        %v1674 = vld [vmem:[%s9 + $0x78] sm:$0xff]
        %v1675 = vld [vmem:[%s10] sm:$0x3]
        %v1677 = vlaneseq
        %v1678 = vshrl.u32 %v1677, 7
        %v1679 = vsub.s32 0, %v1678
        %v1680 = vrot.slane %v1675, %v1679
        %v1681 = vlaneseq
        %v1682 = vshrl.u32 %v1681, 7
        %v1683 = vsub.s32 1, %v1682
        %v1684 = vrot.slane %v1675, %v1683
        %v1703 = vunpack.c.l.b16 %v1659
        %v1704 = vunpack.c.h.b16 %v1659
        %v1705 = vunpack.c.l.b16 %v1660
        %v1706 = vunpack.c.h.b16 %v1660
        %v1707 = vunpack.c.l.b16 %v1661
        %v1708 = vunpack.c.h.b16 %v1661
        %v1709 = vunpack.c.l.b16 %v1662
        %v1710 = vunpack.c.h.b16 %v1662
        %v1711 = vunpack.c.l.b16 %v1663
        %v1712 = vunpack.c.h.b16 %v1663
        %v1713 = vunpack.c.l.b16 %v1664
        %v1714 = vunpack.c.h.b16 %v1664
        %v1715 = vunpack.c.l.b16 %v1665
        %v1716 = vunpack.c.h.b16 %v1665
        %v1717 = vunpack.c.l.b16 %v1666
        %v1718 = vunpack.c.h.b16 %v1666
        %v1719 = vunpack.c.l.b16 %v1667
        %v1720 = vunpack.c.h.b16 %v1667
        %v1721 = vunpack.c.l.b16 %v1668
        %v1722 = vunpack.c.h.b16 %v1668
        %v1723 = vunpack.c.l.b16 %v1669
        %v1724 = vunpack.c.h.b16 %v1669
        %v1725 = vunpack.c.l.b16 %v1670
        %v1726 = vunpack.c.h.b16 %v1670
        %v1727 = vunpack.c.l.b16 %v1671
        %v1728 = vunpack.c.h.b16 %v1671
        %v1729 = vunpack.c.l.b16 %v1672
        %v1730 = vunpack.c.h.b16 %v1672
        %v1731 = vunpack.c.l.b16 %v1673
        %v1732 = vunpack.c.h.b16 %v1673
        %v1733 = vunpack.c.l.b16 %v1674
        %v1734 = vunpack.c.h.b16 %v1674
        %v1735 = vpack.c.b16 %v1705, %v1703
        %v1736 = vpack.c.b16 %v1706, %v1704
        %v1737 = vpack.c.b16 %v1709, %v1707
        %v1738 = vpack.c.b16 %v1710, %v1708
        %v1739 = vpack.c.b16 %v1713, %v1711
        %v1740 = vpack.c.b16 %v1714, %v1712
        %v1741 = vpack.c.b16 %v1717, %v1715
        %v1742 = vpack.c.b16 %v1718, %v1716
        %v1743 = vpack.c.b16 %v1721, %v1719
        %v1744 = vpack.c.b16 %v1722, %v1720
        %v1745 = vpack.c.b16 %v1725, %v1723
        %v1746 = vpack.c.b16 %v1726, %v1724
        %v1747 = vpack.c.b16 %v1729, %v1727
        %v1748 = vpack.c.b16 %v1730, %v1728
        %v1749 = vpack.c.b16 %v1733, %v1731
        %v1750 = vpack.c.b16 %v1734, %v1732
        %1767 = vmatprep.subr.bf16.mxu0 %v1736
        %1768 = vmatpush1.bf16.msra.mxu0 %v1735
        %1769 = vmatprep.subr.bf16.mxu0 %v1738
        %1770 = vmatpush1.bf16.msra.mxu0 %v1737
        %1771 = vmatprep.subr.bf16.mxu0 %v1740
        %1772 = vmatpush1.bf16.msra.mxu0 %v1739
        %1773 = vmatprep.subr.bf16.mxu0 %v1742
        %1774 = vmatpush1.bf16.msra.mxu0 %v1741
        %1775 = vmatprep.subr.bf16.mxu0 %v1744
        %1776 = vmatpush1.bf16.msra.mxu0 %v1743
        %1777 = vmatprep.subr.bf16.mxu0 %v1746
        %1778 = vmatpush1.bf16.msra.mxu0 %v1745
        %1779 = vmatprep.subr.bf16.mxu0 %v1748
        %1780 = vmatpush1.bf16.msra.mxu0 %v1747
        %1781 = vmatprep.subr.bf16.mxu0 %v1750
        %1782 = vmatpush1.bf16.msra.mxu0 %v1749
        %1783 = vmatprep.subr.bf16.mxu0 0
        %1784 = vmatpush1.bf16.msra.mxu0 0
        %1785 = vmatprep.subr.bf16.mxu0 0
        %1786 = vmatpush1.bf16.msra.mxu0 0
        %1787 = vmatprep.subr.bf16.mxu0 0
        %1788 = vmatpush1.bf16.msra.mxu0 0
        %1789 = vmatprep.subr.bf16.mxu0 0
        %1790 = vmatpush1.bf16.msra.mxu0 0
        %1791 = vmatprep.subr.bf16.mxu0 0
        %1792 = vmatpush1.bf16.msra.mxu0 0
        %1793 = vmatprep.subr.bf16.mxu0 0
        %1794 = vmatpush1.bf16.msra.mxu0 0
        %1795 = vmatprep.subr.bf16.mxu0 0
        %1796 = vmatpush1.bf16.msra.mxu0 0
        %1797 = vmatprep.subr.bf16.mxu0 0
        %1798 = vmatpush1.bf16.msra.mxu0 0
        %1799 = vmatprep.mubr.bf16.mxu0 0
        %1800 = vmatmul.mubr.bf16.gmra.mrb[0].mxu0 %v1658
        %v1801 = vpop.f32.mrb[0].mxu0
        %v1802 = vadd.f32 %v1680, %v1801
        %v1803 = vpop.f32.mrb[0].mxu0
        %v1804 = vadd.f32 %v1684, %v1803
        %v1805 = vpop.f32.mrb[0].mxu0
        %v1806 = vpop.f32.mrb[0].mxu0
        %1807 = vdwg.mxu0
        %v1808 = vmax.f32 %v1802, 0.0
        %v1809 = vmax.f32 %v1804, 0.0
        %v1810 = vpack.c.bf16 %v1808, %v1808
        %v1811 = vpack.c.bf16 %v1809, %v1809
        %v1812 = vld [vmem:[%s11] sm:$0xf]
        %v1813 = vld [vmem:[%s11 + $0x4] sm:$0xf]
        %v1814 = vld [vmem:[%s11 + $0x8] sm:$0xf]
        %v1815 = vld [vmem:[%s11 + $0xc] sm:$0xf]
        %v1816 = vld [vmem:[%s11 + $0x10] sm:$0xf]
        %v1817 = vld [vmem:[%s11 + $0x14] sm:$0xf]
        %v1818 = vld [vmem:[%s11 + $0x18] sm:$0xf]
        %v1819 = vld [vmem:[%s11 + $0x1c] sm:$0xf]
        %v1820 = vld [vmem:[%s11 + $0x20] sm:$0xf]
        %v1821 = vld [vmem:[%s11 + $0x24] sm:$0xf]
        %v1822 = vld [vmem:[%s11 + $0x28] sm:$0xf]
        %v1823 = vld [vmem:[%s11 + $0x2c] sm:$0xf]
        %v1824 = vld [vmem:[%s11 + $0x30] sm:$0xf]
        %v1825 = vld [vmem:[%s11 + $0x34] sm:$0xf]
        %v1826 = vld [vmem:[%s11 + $0x38] sm:$0xf]
        %v1827 = vld [vmem:[%s11 + $0x3c] sm:$0xf]
        %v1828 = vld [vmem:[%s11 + $0x40] sm:$0xf]
        %v1829 = vld [vmem:[%s11 + $0x44] sm:$0xf]
        %v1830 = vld [vmem:[%s11 + $0x48] sm:$0xf]
        %v1831 = vld [vmem:[%s11 + $0x4c] sm:$0xf]
        %v1832 = vld [vmem:[%s11 + $0x50] sm:$0xf]
        %v1833 = vld [vmem:[%s11 + $0x54] sm:$0xf]
        %v1834 = vld [vmem:[%s11 + $0x58] sm:$0xf]
        %v1835 = vld [vmem:[%s11 + $0x5c] sm:$0xf]
        %v1836 = vld [vmem:[%s11 + $0x60] sm:$0xf]
        %v1837 = vld [vmem:[%s11 + $0x64] sm:$0xf]
        %v1838 = vld [vmem:[%s11 + $0x68] sm:$0xf]
        %v1839 = vld [vmem:[%s11 + $0x6c] sm:$0xf]
        %v1840 = vld [vmem:[%s11 + $0x70] sm:$0xf]
        %v1841 = vld [vmem:[%s11 + $0x74] sm:$0xf]
        %v1842 = vld [vmem:[%s11 + $0x78] sm:$0xf]
        %v1843 = vld [vmem:[%s11 + $0x7c] sm:$0xf]
        %v1844 = vld [vmem:[%s12] sm:$0x1]
        %v1846 = vlaneseq
        %v1847 = vshrl.u32 %v1846, 7
        %v1848 = vsub.s32 0, %v1847
        %v1849 = vrot.slane %v1844, %v1848
        %v1883 = vunpack.c.l.b16 %v1812
        %v1884 = vunpack.c.l.b16 %v1813
        %v1885 = vunpack.c.l.b16 %v1814
        %v1886 = vunpack.c.l.b16 %v1815
        %v1887 = vunpack.c.l.b16 %v1816
        %v1888 = vunpack.c.l.b16 %v1817
        %v1889 = vunpack.c.l.b16 %v1818
        %v1890 = vunpack.c.l.b16 %v1819
        %v1891 = vunpack.c.l.b16 %v1820
        %v1892 = vunpack.c.l.b16 %v1821
        %v1893 = vunpack.c.l.b16 %v1822
        %v1894 = vunpack.c.l.b16 %v1823
        %v1895 = vunpack.c.l.b16 %v1824
        %v1896 = vunpack.c.l.b16 %v1825
        %v1897 = vunpack.c.l.b16 %v1826
        %v1898 = vunpack.c.l.b16 %v1827
        %v1899 = vunpack.c.l.b16 %v1828
        %v1900 = vunpack.c.l.b16 %v1829
        %v1901 = vunpack.c.l.b16 %v1830
        %v1902 = vunpack.c.l.b16 %v1831
        %v1903 = vunpack.c.l.b16 %v1832
        %v1904 = vunpack.c.l.b16 %v1833
        %v1905 = vunpack.c.l.b16 %v1834
        %v1906 = vunpack.c.l.b16 %v1835
        %v1907 = vunpack.c.l.b16 %v1836
        %v1908 = vunpack.c.l.b16 %v1837
        %v1909 = vunpack.c.l.b16 %v1838
        %v1910 = vunpack.c.l.b16 %v1839
        %v1911 = vunpack.c.l.b16 %v1840
        %v1912 = vunpack.c.l.b16 %v1841
        %v1913 = vunpack.c.l.b16 %v1842
        %v1914 = vunpack.c.l.b16 %v1843
        %v1915 = vpack.c.b16 %v1884, %v1883
        %v1916 = vpack.c.b16 %v1886, %v1885
        %v1917 = vpack.c.b16 %v1888, %v1887
        %v1918 = vpack.c.b16 %v1890, %v1889
        %v1919 = vpack.c.b16 %v1892, %v1891
        %v1920 = vpack.c.b16 %v1894, %v1893
        %v1921 = vpack.c.b16 %v1896, %v1895
        %v1922 = vpack.c.b16 %v1898, %v1897
        %v1923 = vpack.c.b16 %v1900, %v1899
        %v1924 = vpack.c.b16 %v1902, %v1901
        %v1925 = vpack.c.b16 %v1904, %v1903
        %v1926 = vpack.c.b16 %v1906, %v1905
        %v1927 = vpack.c.b16 %v1908, %v1907
        %v1928 = vpack.c.b16 %v1910, %v1909
        %v1929 = vpack.c.b16 %v1912, %v1911
        %v1930 = vpack.c.b16 %v1914, %v1913
        %1947 = vmatprep.subr.bf16.mxu0 0
        %1948 = vmatpush1.bf16.msra.mxu0 %v1915
        %1949 = vmatprep.subr.bf16.mxu0 0
        %1950 = vmatpush1.bf16.msra.mxu0 %v1916
        %1951 = vmatprep.subr.bf16.mxu0 0
        %1952 = vmatpush1.bf16.msra.mxu0 %v1917
        %1953 = vmatprep.subr.bf16.mxu0 0
        %1954 = vmatpush1.bf16.msra.mxu0 %v1918
        %1955 = vmatprep.subr.bf16.mxu0 0
        %1956 = vmatpush1.bf16.msra.mxu0 %v1919
        %1957 = vmatprep.subr.bf16.mxu0 0
        %1958 = vmatpush1.bf16.msra.mxu0 %v1920
        %1959 = vmatprep.subr.bf16.mxu0 0
        %1960 = vmatpush1.bf16.msra.mxu0 %v1921
        %1961 = vmatprep.subr.bf16.mxu0 0
        %1962 = vmatpush1.bf16.msra.mxu0 %v1922
        %1963 = vmatprep.subr.bf16.mxu0 0
        %1964 = vmatpush1.bf16.msra.mxu0 %v1923
        %1965 = vmatprep.subr.bf16.mxu0 0
        %1966 = vmatpush1.bf16.msra.mxu0 %v1924
        %1967 = vmatprep.subr.bf16.mxu0 0
        %1968 = vmatpush1.bf16.msra.mxu0 %v1925
        %1969 = vmatprep.subr.bf16.mxu0 0
        %1970 = vmatpush1.bf16.msra.mxu0 %v1926
        %1971 = vmatprep.subr.bf16.mxu0 0
        %1972 = vmatpush1.bf16.msra.mxu0 %v1927
        %1973 = vmatprep.subr.bf16.mxu0 0
        %1974 = vmatpush1.bf16.msra.mxu0 %v1928
        %1975 = vmatprep.subr.bf16.mxu0 0
        %1976 = vmatpush1.bf16.msra.mxu0 %v1929
        %1977 = vmatprep.subr.bf16.mxu0 0
        %1978 = vmatpush1.bf16.msra.mxu0 %v1930
        %1979 = vmatprep.mubr.bf16.mxu0 %v1811
        %1980 = vmatmul.mubr.bf16.gmra.mrb[0].mxu0 %v1810
        %v1981 = vpop.f32.mrb[0].mxu0
        %v1982 = vadd.f32 %v1849, %v1981
        %v1983 = vpop.f32.mrb[0].mxu0
        %v1984 = vpop.f32.mrb[0].mxu0
        %v1985 = vpop.f32.mrb[0].mxu0
        %1986 = vdwg.mxu0
        %v1987 = vadd.f32 %v1657, %v1982
        %v1988 = vld [vmem:[%s13] sm:$0x1]
        %v1989 = vld [vmem:[%s14] sm:$0x1]
        %1990 = vadd.xlane.f32.xlu0 %v1987
        %v1991 = vpop.xlane.xlu0 %1990
        %v1992 = vmul.f32 %v1991, %v1632
        %v1993 = vmul.f32 %v1987, %v1987
        %1994 = vadd.xlane.f32.xlu0 %v1993
        %v1995 = vpop.xlane.xlu0 %1994
        %v1996 = vmul.f32 %v1995, %v1632
        %v1997 = vmul.f32 %v1992, %v1992
        %v1998 = vsub.f32 %v1996, %v1997
        %v1999 = vsub.f32 %v1987, %v1992
        %v2000 = vadd.f32 %v1998, 1e-05
        %v2001 = vrsqrt.pop %v2000
        %v2002 = vmul.f32 %v1999, %v2001
        %v2004 = vlaneseq
        %v2005 = vshrl.u32 %v2004, 7
        %v2006 = vsub.s32 0, %v2005
        %v2007 = vrot.slane %v1988, %v2006
        %v2009 = vmul.f32 %v2002, %v2007
        %v2011 = vlaneseq
        %v2012 = vshrl.u32 %v2011, 7
        %v2013 = vsub.s32 0, %v2012
        %v2014 = vrot.slane %v1989, %v2013
        %v2016 = vadd.f32 %v2009, %v2014
        %2017 = vst [vmem:[%s603] sm:$0xff] %v2016
        %s2018 = sand.u32 %s389, 1
        %s2019 = scalar_lea.sflag [#allocation4], %s2018
        %s2020 = sand.u32 %s389, 1
        %s2021 = smul.addr %s2020, 8
        %s2022 = scalar_lea.vmem [#allocation8], %s2021
        // Predicated region
        $region93: #{tpu_custom_call.1} parent=79 // pred_check
          %p2023 = pneg %p399
        $region94: #{tpu_custom_call.1} parent=79 // pred_check_branch
          %2025 = sbr.rel (%p2023) target = $region96
        $region95: #{tpu_custom_call.1} parent=79 // pred_region
          %s2027 = ssub.s32 128, 128
          %2028 = vsyncadd %s2019, %s2027
          %s2029 = sadd.s32 %s40, %s39
          %s2030 = smul.addr %s2029, 128
          %s2031 = scalar_lea.hbm %s15, %s2030
          %s2033 = sshll.u32 %s2022, 4
          %s2034 = int_to_ptr.vmem [resolvable:$true] %s2033
          %2036 = dma.vmem_to_hbm [thread:$0]  %s2034, 128, %s2031, %s2019
        $region96: #{tpu_custom_call.1} parent=79 // pred_fallthru
          _
      $region80: #{tpu_custom_call.1} parent=5 // pred_fallthru
        _
      %p2037 = scmp.le.s32.totalorder 2, %s30
      // Predicated region
      $region97: #{tpu_custom_call.1} parent=5 // pred_check
        %p2038 = pneg %p2037
      $region98: #{tpu_custom_call.1} parent=5 // pred_check_branch
        %2040 = sbr.rel (%p2038) target = $region100
      $region99: #{tpu_custom_call.1} parent=5 // pred_region
        %s2041 = ssub.s32 %s30, 2
        // Predicated region
        $region101: #{tpu_custom_call.1} parent=99 // pred_check
          %p2042 = pneg %p405
        $region102: #{tpu_custom_call.1} parent=99 // pred_check_branch
          %2044 = sbr.rel (%p2042) target = $region104
        $region103: #{tpu_custom_call.1} parent=99 // pred_region
          %s2045 = sand.u32 %s390, 1
          %s2046 = scalar_lea.sflag [#allocation4], %s2045
          %s2047 = sand.u32 %s390, 1
          %s2048 = smul.addr %s2047, 8
          %s2049 = scalar_lea.vmem [#allocation8], %s2048
          %2050 = dma.done %s2046, 128
        $region104: #{tpu_custom_call.1} parent=99 // pred_fallthru
          _
      $region100: #{tpu_custom_call.1} parent=5 // pred_fallthru
        _
    $region6: #{tpu_custom_call.1} parent=1 // loop_footer
      %s34 = sadd.s32 1, %s30
    $region7: #{tpu_custom_call.1} parent=1 // loop_footer_branch
      %29 = sbr.rel target = $region3
    $region8: #{tpu_custom_call.1} parent=1 // loop_exit
      _
    %2051 = vsyncpa [#allocation3], 1
    %s2052 = scalar_lea.sflag [#allocation3], 1
    %2053 = vsyncpa %s2052, 1
    %2054 = vsyncpa [#allocation6], 1
    %s2055 = scalar_lea.sflag [#allocation6], 1
    %2056 = vsyncpa %s2055, 1
    %2057 = vsyncpa [#allocation4], 1
    %s2058 = scalar_lea.sflag [#allocation4], 1
    %2059 = vsyncpa %s2058, 1

</llo_original>
